<compile_context>
chip_gen: v7x
topology: tpu7x:2x2x1
jax: 0.10.0
libtpu: 0.0.40
codegen_flags: <defaults>
</compile_context>

<pallas_src>
import functools

import jax
import jax.numpy as jnp
import numpy as np
from jax.experimental import pallas as pl
from jax.experimental.pallas import tpu as pltpu

BN_EPS = 1e-5
LANES = 128
LPAD = 16      # left W pad of the hidden scratch: multiple of the bf16 sublane
RPAD = 16      # pack (and of 8 for f32) so the interior store is tile-aligned


# ------------------------------- fused kernel ------------------------------- #

def _fused_kernel(*refs, expand, stride, use_res, H, W, Ho, Wo):
    if expand:
        (x_ref, w1_ref, b1_ref,
         wdw_ref, b2_ref,
         w3_ref, b3_ref, o_ref, hbuf) = refs
    else:
        (x_ref,
         wdw_ref, b2_ref,
         w3_ref, b3_ref, o_ref, hbuf) = refs

    dt = hbuf.dtype                      # storage / depthwise compute dtype
    ch = hbuf.shape[-1]                  # padded hidden width (mult. of 128)
    WP = hbuf.shape[1]
    x = x_ref[0]                         # (H, W, cin_p) in storage dtype
    cin_p = x.shape[-1]

    # ---- stage 1: 1x1 expand (BN scale pre-folded into w1) + bias + ReLU6 ----
    if expand:
        h1 = jnp.dot(x.reshape(H * W, cin_p), w1_ref[...],
                     preferred_element_type=jnp.float32)
        h1 = jnp.clip(h1 + b1_ref[...], 0.0, 6.0)
        hbuf[1:H + 1, LPAD:LPAD + W, :] = h1.reshape(H, W, ch).astype(dt)
    else:
        hbuf[1:H + 1, LPAD:LPAD + W, :] = x          # hidden == ch_in here

    # ---- zero only the halo cells the 3x3 taps can actually read -------------
    zrow = jnp.zeros((1, WP, ch), dt)
    hbuf[0:1, :, :] = zrow                           # top halo row (aligned)
    hbuf[H + 1:H + 2, :, :] = zrow                   # bottom halo row (aligned)
    zcol = jnp.zeros((H, 1, ch), dt)
    hbuf[1:H + 1, LPAD - 1:LPAD, :] = zcol           # left halo column
    hbuf[1:H + 1, LPAD + W:LPAD + W + 1, :] = zcol   # right halo column

    # ---- stage 2: 3x3 depthwise (BN scale folded into wdw) + bias + ReLU6 ----
    wdw = wdw_ref[...]                               # (9, ch) in storage dtype
    b2 = b2_ref[...][None]                           # (1, 1, ch)

    def tap(kh, kw):
        c0 = LPAD - 1 + kw
        if stride == 1:
            return hbuf[kh:kh + Ho, c0:c0 + Wo, :]
        return hbuf[pl.ds(kh, Ho, stride=stride),
                    pl.ds(c0, Wo, stride=stride), :]

    def wk(kh, kw):
        k = 3 * kh + kw
        return wdw[k:k + 1, :][None]                 # (1, 1, ch)

    acc = tap(0, 0) * wk(0, 0) + b2                  # first-tap init, bias folded
    for kh in range(3):
        for kw in range(3):
            if kh == 0 and kw == 0:
                continue
            acc = acc + tap(kh, kw) * wk(kh, kw)
    h2 = jnp.clip(acc, 0.0, 6.0)

    # ---- stage 3: 1x1 project (BN scale folded into w3) + bias (+ residual) ---
    y = jnp.dot(h2.reshape(Ho * Wo, ch), w3_ref[...],
                preferred_element_type=jnp.float32)
    y = y + b3_ref[...]
    if use_res:                                      # stride == 1 and ch_in == ch_out
        y = y + x.reshape(H * W, cin_p).astype(jnp.float32)
    o_ref[0] = y.reshape(Ho, Wo, y.shape[-1]).astype(o_ref.dtype)


# ------------------------------- host wrapper -------------------------------- #

def _rup(n, m):
    return ((n + m - 1) // m) * m


def _pad_last(a, to):
    d = to - a.shape[-1]
    if d == 0:
        return a
    return jnp.pad(a, [(0, 0)] * (a.ndim - 1) + [(0, d)])


def us_inverted_residual_nhwc(x_nhwc, params, *, ch_in, ch_out, stride,
                              expand_ratio, dtype=jnp.bfloat16):
    """NHWC fused inverted residual.  dtype: storage/depthwise compute dtype
    (bf16 for v6e/v7x fast path, f32 for v5e or exact checks)."""
    assert stride in (1, 2)
    hidden = int(ch_in * expand_ratio)
    expand = expand_ratio != 1
    use_res = (stride == 1 and ch_in == ch_out)

    n, H, W, _ = x_nhwc.shape
    Ho = (H + 2 - 3) // stride + 1
    Wo = (W + 2 - 3) // stride + 1

    cin_p = _rup(ch_in, LANES)
    hid_p = _rup(hidden, LANES)
    cout_p = _rup(ch_out, LANES)

    f32 = jnp.float32
    xp = _pad_last(x_nhwc.astype(f32), cin_p).astype(dtype)

    args = [xp]
    in_specs = [pl.BlockSpec((1, H, W, cin_p), lambda i: (i, 0, 0, 0))]

    def _add2d(a):                        # full (replicated) 2-D operand
        args.append(a)
        in_specs.append(pl.BlockSpec(a.shape, lambda i: (0, 0)))

    # Fold BN scales into the conv weights on the host; only +bias stays in-kernel.
    if expand:
        w1f = params["w1"] * params["s1"][None, :]
        _add2d(jnp.pad(w1f, ((0, cin_p - ch_in), (0, hid_p - hidden))).astype(dtype))
        _add2d(_pad_last(params["b1"], hid_p).reshape(1, hid_p).astype(f32))
    wdwf = params["wdw"].reshape(9, hidden) * params["s2"][None, :]
    _add2d(_pad_last(wdwf, hid_p).astype(dtype))
    _add2d(_pad_last(params["b2"], hid_p).reshape(1, hid_p).astype(dtype))
    w3f = params["w3"] * params["s3"][None, :]
    _add2d(jnp.pad(w3f, ((0, hid_p - hidden), (0, cout_p - ch_out))).astype(dtype))
    _add2d(_pad_last(params["b3"], cout_p).reshape(1, cout_p).astype(f32))

    kern = functools.partial(_fused_kernel, expand=expand, stride=stride,
                             use_res=use_res, H=H, W=W, Ho=Ho, Wo=Wo)

    out_p = pl.pallas_call(
        kern,
        out_shape=jax.ShapeDtypeStruct((n, Ho, Wo, cout_p), dtype),
        grid=(n,),
        in_specs=in_specs,
        out_specs=pl.BlockSpec((1, Ho, Wo, cout_p), lambda i: (i, 0, 0, 0)),
        scratch_shapes=[pltpu.VMEM((H + 2, LPAD + W + RPAD, hid_p), dtype)],
        compiler_params=pltpu.CompilerParams(
            dimension_semantics=("parallel",)),
    )(*args)

    return out_p[..., :ch_out].astype(jnp.float32)


def us_inverted_residual(x_nchw, params, *, ch_in, ch_out, stride, expand_ratio,
                         dtype=jnp.bfloat16):
    # TODO(synk): NCHW<->NHWC transposes only to match the PyTorch interface; an
    # NHWC model should call us_inverted_residual_nhwc directly and skip both
    # full-tensor copies.
    x = jnp.transpose(x_nchw, (0, 2, 3, 1))
    y = us_inverted_residual_nhwc(x, params, ch_in=ch_in, ch_out=ch_out,
                                  stride=stride, expand_ratio=expand_ratio,
                                  dtype=dtype)
    return jnp.transpose(y, (0, 3, 1, 2))            # NHWC -> NCHW


# ------------------------------- init / reference ---------------------------- #

def init_params(key, ch_in, ch_out, expand_ratio):
    hidden = int(ch_in * expand_ratio)
    keys = jax.random.split(key, 16)

    def bn(kg, kb, km, kv, c):
        gamma = jax.random.uniform(kg, (c,), jnp.float32, 0.5, 1.5)
        beta = jax.random.normal(kb, (c,), jnp.float32) * 0.1
        mean = jax.random.normal(km, (c,), jnp.float32) * 0.1
        var = jax.random.uniform(kv, (c,), jnp.float32, 0.5, 1.5)
        scale = gamma / jnp.sqrt(var + BN_EPS)
        bias = beta - mean * scale
        return scale, bias

    p = {}
    if expand_ratio != 1:
        p["w1"] = jax.random.normal(keys[0], (ch_in, hidden), jnp.float32) * 0.2
        p["s1"], p["b1"] = bn(keys[1], keys[2], keys[3], keys[4], hidden)
    p["wdw"] = jax.random.normal(keys[5], (3, 3, hidden), jnp.float32) * 0.2
    p["s2"], p["b2"] = bn(keys[6], keys[7], keys[8], keys[9], hidden)
    p["w3"] = jax.random.normal(keys[10], (hidden, ch_out), jnp.float32) * 0.2
    p["s3"], p["b3"] = bn(keys[11], keys[12], keys[13], keys[14], ch_out)
    return p


def ref_forward(x_nchw, params, *, ch_in, ch_out, stride, expand_ratio):
    hidden = int(ch_in * expand_ratio)
    x = jnp.transpose(x_nchw, (0, 2, 3, 1))
    h = x
    if expand_ratio != 1:
        h = jnp.einsum("nhwc,cd->nhwd", x, params["w1"])
        h = jnp.clip(h * params["s1"] + params["b1"], 0.0, 6.0)
    hp = jnp.pad(h, ((0, 0), (1, 1), (1, 1), (0, 0)))
    H, W = h.shape[1], h.shape[2]
    Ho = (H + 2 - 3) // stride + 1
    Wo = (W + 2 - 3) // stride + 1
    acc = jnp.zeros((h.shape[0], Ho, Wo, hidden), jnp.float32)
    for kh in range(3):
        for kw in range(3):
            sl = hp[:, kh:kh + stride * (Ho - 1) + 1:stride,
                    kw:kw + stride * (Wo - 1) + 1:stride, :]
            acc = acc + sl * params["wdw"][kh, kw][None, None, None, :]
    d = jnp.clip(acc * params["s2"] + params["b2"], 0.0, 6.0)
    y = jnp.einsum("nhwc,cd->nhwd", d, params["w3"])
    y = y * params["s3"] + params["b3"]
    if stride == 1 and ch_in == ch_out:
        y = y + x
    return jnp.transpose(y, (0, 3, 1, 2))


# ------------------------------------ main ------------------------------------ #

if __name__ == "__main__":
    root = jax.random.PRNGKey(0)
    N, H, W = 2, 16, 16

    # (ch_in, ch_out, stride, expand_ratio, dtype, rtol, atol)
    configs = [
        (4, 4, 1, 6, jnp.float32, 2e-4, 2e-4),    # expand + residual, exact path
        (6, 8, 2, 6, jnp.float32, 2e-4, 2e-4),    # stride=2, no residual
        (4, 4, 1, 1, jnp.float32, 2e-4, 2e-4),    # expand_ratio=1 path
        (4, 4, 1, 6, jnp.bfloat16, 5e-2, 1.5e-1), # bf16 fast path (v6e/v7x)
    ]

    for idx, (ci, co, st, er, dt, rtol, atol) in enumerate(configs):
        k_x, k_p = jax.random.split(jax.random.fold_in(root, idx))
        x = jax.random.normal(k_x, (N, ci, H, W), jnp.float32)   # NCHW like PyTorch
        params = init_params(k_p, ci, co, er)

        out = us_inverted_residual(x, params, ch_in=ci, ch_out=co, stride=st,
                                   expand_ratio=er, dtype=dt)
        out = jax.block_until_ready(out)

        ref = ref_forward(x, params, ch_in=ci, ch_out=co, stride=st,
                          expand_ratio=er)
        np.testing.assert_allclose(np.asarray(out), np.asarray(ref),
                                   rtol=rtol, atol=atol)

    print("KERNEL_OK")
</pallas_src>

<mosaic_0001>
module attributes {stable_mosaic.version = 11 : i64} {
  func.func @_fused_kernel(%arg0: i32, %arg1: memref<1x16x16x128xf32, #tpu.memory_space<vmem>>, %arg2: memref<128x128xf32, #tpu.memory_space<vmem>>, %arg3: memref<1x128xf32, #tpu.memory_space<vmem>>, %arg4: memref<9x128xf32, #tpu.memory_space<vmem>>, %arg5: memref<1x128xf32, #tpu.memory_space<vmem>>, %arg6: memref<128x128xf32, #tpu.memory_space<vmem>>, %arg7: memref<1x128xf32, #tpu.memory_space<vmem>>, %arg8: memref<1x16x16x128xf32, #tpu.memory_space<vmem>>, %arg9: memref<18x48x128xf32, #tpu.memory_space<vmem>>) attributes {dimension_semantics = [#tpu.dimension_semantics<parallel>], iteration_bounds = array<i64: 2>, scalar_prefetch = 0 : i64, scratch_operands = 1 : i64, tpu.core_type = #tpu.core_type<tc>, window_params = [{transform_indices = @transform_0, window_bounds = array<i64: 1, 16, 16, 128>}, {pipeline_mode = #tpu.pipeline_mode<synchronous>, transform_indices = @transform_1, window_bounds = array<i64: 128, 128>}, {pipeline_mode = #tpu.pipeline_mode<synchronous>, transform_indices = @transform_2, window_bounds = array<i64: 1, 128>}, {pipeline_mode = #tpu.pipeline_mode<synchronous>, transform_indices = @transform_3, window_bounds = array<i64: 9, 128>}, {pipeline_mode = #tpu.pipeline_mode<synchronous>, transform_indices = @transform_4, window_bounds = array<i64: 1, 128>}, {pipeline_mode = #tpu.pipeline_mode<synchronous>, transform_indices = @transform_5, window_bounds = array<i64: 128, 128>}, {pipeline_mode = #tpu.pipeline_mode<synchronous>, transform_indices = @transform_6, window_bounds = array<i64: 1, 128>}, {transform_indices = @transform_7, window_bounds = array<i64: 1, 16, 16, 128>}]} {
    %c0 = arith.constant 0 : index
    %c0_0 = arith.constant 0 : index
    %c0_1 = arith.constant 0 : index
    %c0_2 = arith.constant 0 : index
    %0 = vector.load %arg1[%c0, %c0_0, %c0_1, %c0_2] : memref<1x16x16x128xf32, #tpu.memory_space<vmem>>, vector<1x16x16x128xf32>
    %1 = vector.shape_cast %0 : vector<1x16x16x128xf32> to vector<16x16x128xf32>
    %2 = vector.shape_cast %1 : vector<16x16x128xf32> to vector<256x128xf32>
    %c0_3 = arith.constant 0 : index
    %c0_4 = arith.constant 0 : index
    %3 = vector.load %arg2[%c0_3, %c0_4] : memref<128x128xf32, #tpu.memory_space<vmem>>, vector<128x128xf32>
    %cst = arith.constant dense<0.000000e+00> : vector<256x128xf32>
    %4 = tpu.matmul %2, %3, %cst {dimension_numbers = #tpu.dot_dimension_numbers<[1], [0], [0], [1], [0, 0, 1, 1], [], []>} : vector<256x128xf32>, vector<128x128xf32>, vector<256x128xf32> -> vector<256x128xf32>
    %c0_5 = arith.constant 0 : index
    %c0_6 = arith.constant 0 : index
    %5 = vector.load %arg3[%c0_5, %c0_6] : memref<1x128xf32, #tpu.memory_space<vmem>>, vector<1x128xf32>
    %6 = vector.broadcast %5 : vector<1x128xf32> to vector<256x128xf32>
    %7 = arith.addf %4, %6 : vector<256x128xf32>
    %cst_7 = arith.constant 0.000000e+00 : f32
    %cst_8 = arith.constant 6.000000e+00 : f32
    %8 = vector.broadcast %cst_7 : f32 to vector<256x128xf32>
    %9 = arith.maximumf %8, %7 : vector<256x128xf32>
    %10 = vector.broadcast %cst_8 : f32 to vector<256x128xf32>
    %11 = arith.minimumf %10, %9 : vector<256x128xf32>
    %12 = vector.shape_cast %11 : vector<256x128xf32> to vector<16x16x128xf32>
    %c1 = arith.constant 1 : index
    %c16 = arith.constant 16 : index
    %c0_9 = arith.constant 0 : index
    %13 = vector.load %arg9[%c1, %c16, %c0_9] : memref<18x48x128xf32, #tpu.memory_space<vmem>>, vector<16x16x128xf32>
    tpu.vector_store %arg9[%c1, %c16, %c0_9], %12 {strides = array<i32>} : memref<18x48x128xf32, #tpu.memory_space<vmem>>, vector<16x16x128xf32>,
    %cst_10 = arith.constant 0.000000e+00 : f32
    %14 = vector.broadcast %cst_10 : f32 to vector<1x48x128xf32>
    %c0_11 = arith.constant 0 : index
    %c0_12 = arith.constant 0 : index
    %c0_13 = arith.constant 0 : index
    %15 = vector.load %arg9[%c0_11, %c0_12, %c0_13] : memref<18x48x128xf32, #tpu.memory_space<vmem>>, vector<1x48x128xf32>
    tpu.vector_store %arg9[%c0_11, %c0_12, %c0_13], %14 {strides = array<i32>} : memref<18x48x128xf32, #tpu.memory_space<vmem>>, vector<1x48x128xf32>,
    %c17 = arith.constant 17 : index
    %c0_14 = arith.constant 0 : index
    %c0_15 = arith.constant 0 : index
    %16 = vector.load %arg9[%c17, %c0_14, %c0_15] : memref<18x48x128xf32, #tpu.memory_space<vmem>>, vector<1x48x128xf32>
    tpu.vector_store %arg9[%c17, %c0_14, %c0_15], %14 {strides = array<i32>} : memref<18x48x128xf32, #tpu.memory_space<vmem>>, vector<1x48x128xf32>,
    %cst_16 = arith.constant 0.000000e+00 : f32
    %17 = vector.broadcast %cst_16 : f32 to vector<16x1x128xf32>
    %c1_17 = arith.constant 1 : index
    %c15 = arith.constant 15 : index
    %c0_18 = arith.constant 0 : index
    %18 = vector.load %arg9[%c1_17, %c15, %c0_18] : memref<18x48x128xf32, #tpu.memory_space<vmem>>, vector<16x1x128xf32>
    tpu.vector_store %arg9[%c1_17, %c15, %c0_18], %17 {strides = array<i32>} : memref<18x48x128xf32, #tpu.memory_space<vmem>>, vector<16x1x128xf32>,
    %c1_19 = arith.constant 1 : index
    %c32 = arith.constant 32 : index
    %c0_20 = arith.constant 0 : index
    %19 = vector.load %arg9[%c1_19, %c32, %c0_20] : memref<18x48x128xf32, #tpu.memory_space<vmem>>, vector<16x1x128xf32>
    tpu.vector_store %arg9[%c1_19, %c32, %c0_20], %17 {strides = array<i32>} : memref<18x48x128xf32, #tpu.memory_space<vmem>>, vector<16x1x128xf32>,
    %c0_21 = arith.constant 0 : index
    %c0_22 = arith.constant 0 : index
    %20 = vector.load %arg4[%c0_21, %c0_22] : memref<9x128xf32, #tpu.memory_space<vmem>>, vector<9x128xf32>
    %c0_23 = arith.constant 0 : index
    %c0_24 = arith.constant 0 : index
    %21 = vector.load %arg5[%c0_23, %c0_24] : memref<1x128xf32, #tpu.memory_space<vmem>>, vector<1x128xf32>
    %22 = vector.shape_cast %21 : vector<1x128xf32> to vector<1x1x128xf32>
    %c0_25 = arith.constant 0 : index
    %c15_26 = arith.constant 15 : index
    %c0_27 = arith.constant 0 : index
    %23 = vector.load %arg9[%c0_25, %c15_26, %c0_27] : memref<18x48x128xf32, #tpu.memory_space<vmem>>, vector<16x16x128xf32>
    %24 = vector.extract_strided_slice %20 {offsets = [0, 0], sizes = [1, 128], strides = [1, 1]} : vector<9x128xf32> to vector<1x128xf32>
    %25 = vector.shape_cast %24 : vector<1x128xf32> to vector<1x1x128xf32>
    %26 = vector.broadcast %25 : vector<1x1x128xf32> to vector<16x16x128xf32>
    %27 = arith.mulf %23, %26 : vector<16x16x128xf32>
    %28 = vector.broadcast %22 : vector<1x1x128xf32> to vector<16x16x128xf32>
    %29 = arith.addf %27, %28 : vector<16x16x128xf32>
    %c0_28 = arith.constant 0 : index
    %c16_29 = arith.constant 16 : index
    %c0_30 = arith.constant 0 : index
    %30 = vector.load %arg9[%c0_28, %c16_29, %c0_30] : memref<18x48x128xf32, #tpu.memory_space<vmem>>, vector<16x16x128xf32>
    %31 = vector.extract_strided_slice %20 {offsets = [1, 0], sizes = [1, 128], strides = [1, 1]} : vector<9x128xf32> to vector<1x128xf32>
    %32 = vector.shape_cast %31 : vector<1x128xf32> to vector<1x1x128xf32>
    %33 = vector.broadcast %32 : vector<1x1x128xf32> to vector<16x16x128xf32>
    %34 = arith.mulf %30, %33 : vector<16x16x128xf32>
    %35 = arith.addf %29, %34 : vector<16x16x128xf32>
    %c0_31 = arith.constant 0 : index
    %c17_32 = arith.constant 17 : index
    %c0_33 = arith.constant 0 : index
    %36 = vector.load %arg9[%c0_31, %c17_32, %c0_33] : memref<18x48x128xf32, #tpu.memory_space<vmem>>, vector<16x16x128xf32>
    %37 = vector.extract_strided_slice %20 {offsets = [2, 0], sizes = [1, 128], strides = [1, 1]} : vector<9x128xf32> to vector<1x128xf32>
    %38 = vector.shape_cast %37 : vector<1x128xf32> to vector<1x1x128xf32>
    %39 = vector.broadcast %38 : vector<1x1x128xf32> to vector<16x16x128xf32>
    %40 = arith.mulf %36, %39 : vector<16x16x128xf32>
    %41 = arith.addf %35, %40 : vector<16x16x128xf32>
    %c1_34 = arith.constant 1 : index
    %c15_35 = arith.constant 15 : index
    %c0_36 = arith.constant 0 : index
    %42 = vector.load %arg9[%c1_34, %c15_35, %c0_36] : memref<18x48x128xf32, #tpu.memory_space<vmem>>, vector<16x16x128xf32>
    %43 = vector.extract_strided_slice %20 {offsets = [3, 0], sizes = [1, 128], strides = [1, 1]} : vector<9x128xf32> to vector<1x128xf32>
    %44 = vector.shape_cast %43 : vector<1x128xf32> to vector<1x1x128xf32>
    %45 = vector.broadcast %44 : vector<1x1x128xf32> to vector<16x16x128xf32>
    %46 = arith.mulf %42, %45 : vector<16x16x128xf32>
    %47 = arith.addf %41, %46 : vector<16x16x128xf32>
    %c1_37 = arith.constant 1 : index
    %c16_38 = arith.constant 16 : index
    %c0_39 = arith.constant 0 : index
    %48 = vector.load %arg9[%c1_37, %c16_38, %c0_39] : memref<18x48x128xf32, #tpu.memory_space<vmem>>, vector<16x16x128xf32>
    %49 = vector.extract_strided_slice %20 {offsets = [4, 0], sizes = [1, 128], strides = [1, 1]} : vector<9x128xf32> to vector<1x128xf32>
    %50 = vector.shape_cast %49 : vector<1x128xf32> to vector<1x1x128xf32>
    %51 = vector.broadcast %50 : vector<1x1x128xf32> to vector<16x16x128xf32>
    %52 = arith.mulf %48, %51 : vector<16x16x128xf32>
    %53 = arith.addf %47, %52 : vector<16x16x128xf32>
    %c1_40 = arith.constant 1 : index
    %c17_41 = arith.constant 17 : index
    %c0_42 = arith.constant 0 : index
    %54 = vector.load %arg9[%c1_40, %c17_41, %c0_42] : memref<18x48x128xf32, #tpu.memory_space<vmem>>, vector<16x16x128xf32>
    %55 = vector.extract_strided_slice %20 {offsets = [5, 0], sizes = [1, 128], strides = [1, 1]} : vector<9x128xf32> to vector<1x128xf32>
    %56 = vector.shape_cast %55 : vector<1x128xf32> to vector<1x1x128xf32>
    %57 = vector.broadcast %56 : vector<1x1x128xf32> to vector<16x16x128xf32>
    %58 = arith.mulf %54, %57 : vector<16x16x128xf32>
    %59 = arith.addf %53, %58 : vector<16x16x128xf32>
    %c2 = arith.constant 2 : index
    %c15_43 = arith.constant 15 : index
    %c0_44 = arith.constant 0 : index
    %60 = vector.load %arg9[%c2, %c15_43, %c0_44] : memref<18x48x128xf32, #tpu.memory_space<vmem>>, vector<16x16x128xf32>
    %61 = vector.extract_strided_slice %20 {offsets = [6, 0], sizes = [1, 128], strides = [1, 1]} : vector<9x128xf32> to vector<1x128xf32>
    %62 = vector.shape_cast %61 : vector<1x128xf32> to vector<1x1x128xf32>
    %63 = vector.broadcast %62 : vector<1x1x128xf32> to vector<16x16x128xf32>
    %64 = arith.mulf %60, %63 : vector<16x16x128xf32>
    %65 = arith.addf %59, %64 : vector<16x16x128xf32>
    %c2_45 = arith.constant 2 : index
    %c16_46 = arith.constant 16 : index
    %c0_47 = arith.constant 0 : index
    %66 = vector.load %arg9[%c2_45, %c16_46, %c0_47] : memref<18x48x128xf32, #tpu.memory_space<vmem>>, vector<16x16x128xf32>
    %67 = vector.extract_strided_slice %20 {offsets = [7, 0], sizes = [1, 128], strides = [1, 1]} : vector<9x128xf32> to vector<1x128xf32>
    %68 = vector.shape_cast %67 : vector<1x128xf32> to vector<1x1x128xf32>
    %69 = vector.broadcast %68 : vector<1x1x128xf32> to vector<16x16x128xf32>
    %70 = arith.mulf %66, %69 : vector<16x16x128xf32>
    %71 = arith.addf %65, %70 : vector<16x16x128xf32>
    %c2_48 = arith.constant 2 : index
    %c17_49 = arith.constant 17 : index
    %c0_50 = arith.constant 0 : index
    %72 = vector.load %arg9[%c2_48, %c17_49, %c0_50] : memref<18x48x128xf32, #tpu.memory_space<vmem>>, vector<16x16x128xf32>
    %73 = vector.extract_strided_slice %20 {offsets = [8, 0], sizes = [1, 128], strides = [1, 1]} : vector<9x128xf32> to vector<1x128xf32>
    %74 = vector.shape_cast %73 : vector<1x128xf32> to vector<1x1x128xf32>
    %75 = vector.broadcast %74 : vector<1x1x128xf32> to vector<16x16x128xf32>
    %76 = arith.mulf %72, %75 : vector<16x16x128xf32>
    %77 = arith.addf %71, %76 : vector<16x16x128xf32>
    %cst_51 = arith.constant 0.000000e+00 : f32
    %cst_52 = arith.constant 6.000000e+00 : f32
    %78 = vector.broadcast %cst_51 : f32 to vector<16x16x128xf32>
    %79 = arith.maximumf %78, %77 : vector<16x16x128xf32>
    %80 = vector.broadcast %cst_52 : f32 to vector<16x16x128xf32>
    %81 = arith.minimumf %80, %79 : vector<16x16x128xf32>
    %82 = vector.shape_cast %81 : vector<16x16x128xf32> to vector<256x128xf32>
    %c0_53 = arith.constant 0 : index
    %c0_54 = arith.constant 0 : index
    %83 = vector.load %arg6[%c0_53, %c0_54] : memref<128x128xf32, #tpu.memory_space<vmem>>, vector<128x128xf32>
    %cst_55 = arith.constant dense<0.000000e+00> : vector<256x128xf32>
    %84 = tpu.matmul %82, %83, %cst_55 {dimension_numbers = #tpu.dot_dimension_numbers<[1], [0], [0], [1], [0, 0, 1, 1], [], []>} : vector<256x128xf32>, vector<128x128xf32>, vector<256x128xf32> -> vector<256x128xf32>
    %c0_56 = arith.constant 0 : index
    %c0_57 = arith.constant 0 : index
    %85 = vector.load %arg7[%c0_56, %c0_57] : memref<1x128xf32, #tpu.memory_space<vmem>>, vector<1x128xf32>
    %86 = vector.broadcast %85 : vector<1x128xf32> to vector<256x128xf32>
    %87 = arith.addf %84, %86 : vector<256x128xf32>
    %88 = vector.shape_cast %1 : vector<16x16x128xf32> to vector<256x128xf32>
    %89 = arith.addf %87, %88 : vector<256x128xf32>
    %90 = vector.shape_cast %89 : vector<256x128xf32> to vector<16x16x128xf32>
    %c0_58 = arith.constant 0 : index
    %c0_59 = arith.constant 0 : index
    %c0_60 = arith.constant 0 : index
    %c0_61 = arith.constant 0 : index
    %91 = vector.load %arg8[%c0_58, %c0_59, %c0_60, %c0_61] : memref<1x16x16x128xf32, #tpu.memory_space<vmem>>, vector<1x16x16x128xf32>
    %92 = vector.shape_cast %91 : vector<1x16x16x128xf32> to vector<16x16x128xf32>
    %93 = vector.shape_cast %90 : vector<16x16x128xf32> to vector<1x16x16x128xf32>
    tpu.vector_store %arg8[%c0_58, %c0_59, %c0_60, %c0_61], %93 {strides = array<i32>} : memref<1x16x16x128xf32, #tpu.memory_space<vmem>>, vector<1x16x16x128xf32>,
    return
  }
  func.func @transform_0(%arg0: i32) -> (i32, i32, i32, i32) {
    %c0_i32 = arith.constant 0 : i32
    %c0_i32_0 = arith.constant 0 : i32
    %c0_i32_1 = arith.constant 0 : i32
    %c0_i32_2 = arith.constant 0 : i32
    return %arg0, %c0_i32, %c0_i32_0, %c0_i32_1 : i32, i32, i32, i32
  }
  func.func @transform_1(%arg0: i32) -> (i32, i32) {
    %c0_i32 = arith.constant 0 : i32
    %c0_i32_0 = arith.constant 0 : i32
    %c0_i32_1 = arith.constant 0 : i32
    return %c0_i32, %c0_i32_0 : i32, i32
  }
  func.func @transform_2(%arg0: i32) -> (i32, i32) {
    %c0_i32 = arith.constant 0 : i32
    %c0_i32_0 = arith.constant 0 : i32
    %c0_i32_1 = arith.constant 0 : i32
    return %c0_i32, %c0_i32_0 : i32, i32
  }
  func.func @transform_3(%arg0: i32) -> (i32, i32) {
    %c0_i32 = arith.constant 0 : i32
    %c0_i32_0 = arith.constant 0 : i32
    %c0_i32_1 = arith.constant 0 : i32
    return %c0_i32, %c0_i32_0 : i32, i32
  }
  func.func @transform_4(%arg0: i32) -> (i32, i32) {
    %c0_i32 = arith.constant 0 : i32
    %c0_i32_0 = arith.constant 0 : i32
    %c0_i32_1 = arith.constant 0 : i32
    return %c0_i32, %c0_i32_0 : i32, i32
  }
  func.func @transform_5(%arg0: i32) -> (i32, i32) {
    %c0_i32 = arith.constant 0 : i32
    %c0_i32_0 = arith.constant 0 : i32
    %c0_i32_1 = arith.constant 0 : i32
    return %c0_i32, %c0_i32_0 : i32, i32
  }
  func.func @transform_6(%arg0: i32) -> (i32, i32) {
    %c0_i32 = arith.constant 0 : i32
    %c0_i32_0 = arith.constant 0 : i32
    %c0_i32_1 = arith.constant 0 : i32
    return %c0_i32, %c0_i32_0 : i32, i32
  }
  func.func @transform_7(%arg0: i32) -> (i32, i32, i32, i32) {
    %c0_i32 = arith.constant 0 : i32
    %c0_i32_0 = arith.constant 0 : i32
    %c0_i32_1 = arith.constant 0 : i32
    %c0_i32_2 = arith.constant 0 : i32
    return %arg0, %c0_i32, %c0_i32_0, %c0_i32_1 : i32, i32, i32, i32
  }
}

</mosaic_0001>

<llo_original>
// kernel: tpu_custom_call.1
$region0: #{tpu_custom_call.1}
  #allocation0 [shape = 'u32[]', space=smem, size = 0x4, offset = 0x4, fixed_abs, tag = 'smem constant byte address 0x4 - core index']
  #allocation1 [shape = 'u32[144,128]{1,0:T(1,128)}', space=vmem, size = 0x12000, scoped, tag = 'internal scratch']
  #allocation2 [shape = 'f32[18,48,128]{2,1,0:T(8,128)}', space=vmem, size = 0x6c000, scoped, tag = 'scratch operand']
  %s0 = inlined_call_operand.hbm [shape: f32[2,16,16,128], index: 0, kind: input, shape index: {}]
  %s1 = inlined_call_operand.hbm [shape: f32[128,128], index: 1, kind: input, shape index: {}]
  %s2 = inlined_call_operand.vmem [shape: f32[1,128], index: 2, kind: input, shape index: {}]
  %s3 = inlined_call_operand.hbm [shape: f32[9,128], index: 3, kind: input, shape index: {}]
  %s4 = inlined_call_operand.vmem [shape: f32[1,128], index: 4, kind: input, shape index: {}]
  %s5 = inlined_call_operand.hbm [shape: f32[128,128], index: 5, kind: input, shape index: {}]
  %s6 = inlined_call_operand.vmem [shape: f32[1,128], index: 6, kind: input, shape index: {}]
  %s7 = inlined_call_operand.hbm [shape: f32[2,16,16,128], index: 7, kind: output, shape index: {}]
  %s8 = sld [smem:[#allocation0]]
  $region77: #{tpu_custom_call.1} parent=0
    _
  %s10 = ssub.s32 1, %s8
  %s11 = scalar_select 0, %s10, %s8
  $region1: #{tpu_custom_call.1} parent=0
    #allocation3 [shape = 'u8[262144]{0}', space=vmem, size = 0x40000, scoped, tag = 'input window, operand 0']
    #allocation4 [shape = 's32[2]{0}', space=sflag, size = 0x8, scoped, tag = 'scoped memory for tpu_custom_call.1']
    #allocation5 [shape = 's32[2]{0}', space=sflag, size = 0x8, scoped, tag = 'scoped memory for tpu_custom_call.1']
    #allocation6 [shape = 'u8[65536]{0}', space=vmem, size = 0x10000, scoped, tag = 'input window, operand 1, single buffered']
    #allocation7 [shape = 's32[1]{0}', space=sflag, size = 0x4, scoped, tag = 'scoped memory for tpu_custom_call.1']
    #allocation8 [shape = 'u8[8192]{0}', space=vmem, size = 0x2000, scoped, tag = 'input window, operand 3, single buffered']
    #allocation9 [shape = 'u8[65536]{0}', space=vmem, size = 0x10000, scoped, tag = 'input window, operand 5, single buffered']
    #allocation10 [shape = 's32[1]{0}', space=sflag, size = 0x4, scoped, tag = 'scoped memory for tpu_custom_call.1']
    #allocation11 [shape = 'u8[262144]{0}', space=vmem, size = 0x40000, scoped, tag = 'output window, operand 0']
    %12 = vsyncpa [#allocation4], 0
    %s13 = scalar_lea.sflag [#allocation4], 1
    %14 = vsyncpa %s13, 0
    %15 = vsyncpa [#allocation7], 0
    %16 = vsyncpa [#allocation10], 0
    %17 = vsyncpa [#allocation5], 0
    %s18 = scalar_lea.sflag [#allocation5], 1
    %19 = vsyncpa %s18, 0
    loop: start=0, step=1, limit=4
    $region2: #{tpu_custom_call.1} parent=1 // loop_pre_header
      _
    $region3: #{tpu_custom_call.1} parent=1 // loop_header
      %s21 = sphi 0, %s25
      %p22 = scmp.ge.s32.totalorder %s21, 4
      %s31 = sphi 0, %s33
      %s34 = sphi 0, %s31
      %s35 = sphi 0, %s34
      %s51 = sphi 0, %s35
      %s55 = sphi 0, %s55
      %s57 = sphi 0, %s55
      %s58 = sphi 0, %s57
      %s72 = sphi 0, %s58
      %s76 = sphi 0, %s76
      %s78 = sphi 0, %s76
      %s79 = sphi 0, %s78
      %s93 = sphi 0, %s79
      %s97 = sphi 0, %s97
      %s99 = sphi 0, %s97
      %s100 = sphi 0, %s99
      %s114 = sphi 0, %s100
      %s118 = sphi 0, %s118
      %s120 = sphi 0, %s118
      %s121 = sphi 0, %s120
      %s135 = sphi 0, %s121
      %s139 = sphi 0, %s139
      %s141 = sphi 0, %s139
      %s142 = sphi 0, %s141
      %s156 = sphi 0, %s142
      %s160 = sphi 0, %s160
      %s162 = sphi 0, %s160
      %s163 = sphi 0, %s162
      %s177 = sphi 0, %s163
      %s183 = sphi 0, %s185
      %s186 = sphi 0, %s183
      %s187 = sphi 0, %s186
      %s203 = sphi 0, %s187
    $region4: #{tpu_custom_call.1} parent=1 // loop_header_branch
      %24 = sbr.rel (%p22) target = $region8
    $region5: #{tpu_custom_call.1} parent=1 // loop_body
      %s26 = ssub.s32 %s21, 1
      %s27 = ssub.s32 %s21, 2
      %s28 = sadd.s32 %s21, 1
      %s29 = ssub.s32 %s21, %s28
      %p30 = scmp.eq.s32.totalorder %s29, 0
      %s32 = sadd.s32 %s31, 1
      %s33 = scalar_select %p30, %s31, %s32
      %p36 = pneg %p30
      %p37 = scmp.eq.s32.totalorder %s21, 1
      %p38 = por %p36, %p37
      %p39 = scmp.ne.s32.totalorder %s31, %s34
      %p40 = scmp.eq.s32.totalorder %s21, 0
      %p41 = por %p39, %p40
      %p42 = scmp.ne.s32.totalorder %s31, %s34
      %p43 = scmp.eq.s32.totalorder %s26, 1
      %p44 = por %p42, %p43
      %p45 = scmp.ne.s32.totalorder %s34, %s35
      %p46 = scmp.eq.s32.totalorder %s26, 0
      %p47 = por %p45, %p46
      %p48 = scmp.ne.s32.totalorder %s34, %s35
      %p49 = scmp.eq.s32.totalorder %s27, 1
      %p50 = por %p48, %p49
      %p52 = scmp.ne.s32.totalorder %s35, %s51
      %p53 = scmp.eq.s32.totalorder %s27, 0
      %p54 = por %p52, %p53
      %s56 = sadd.s32 %s55, 1
      %p59 = scmp.eq.s32.totalorder %s21, 1
      %p60 = scmp.ne.s32.totalorder %s55, %s57
      %p61 = scmp.eq.s32.totalorder %s21, 0
      %p62 = por %p60, %p61
      %p63 = scmp.ne.s32.totalorder %s55, %s57
      %p64 = scmp.eq.s32.totalorder %s26, 1
      %p65 = por %p63, %p64
      %p66 = scmp.ne.s32.totalorder %s57, %s58
      %p67 = scmp.eq.s32.totalorder %s26, 0
      %p68 = por %p66, %p67
      %p69 = scmp.ne.s32.totalorder %s57, %s58
      %p70 = scmp.eq.s32.totalorder %s27, 1
      %p71 = por %p69, %p70
      %p73 = scmp.ne.s32.totalorder %s58, %s72
      %p74 = scmp.eq.s32.totalorder %s27, 0
      %p75 = por %p73, %p74
      %s77 = sadd.s32 %s76, 1
      %p80 = scmp.eq.s32.totalorder %s21, 1
      %p81 = scmp.ne.s32.totalorder %s76, %s78
      %p82 = scmp.eq.s32.totalorder %s21, 0
      %p83 = por %p81, %p82
      %p84 = scmp.ne.s32.totalorder %s76, %s78
      %p85 = scmp.eq.s32.totalorder %s26, 1
      %p86 = por %p84, %p85
      %p87 = scmp.ne.s32.totalorder %s78, %s79
      %p88 = scmp.eq.s32.totalorder %s26, 0
      %p89 = por %p87, %p88
      %p90 = scmp.ne.s32.totalorder %s78, %s79
      %p91 = scmp.eq.s32.totalorder %s27, 1
      %p92 = por %p90, %p91
      %p94 = scmp.ne.s32.totalorder %s79, %s93
      %p95 = scmp.eq.s32.totalorder %s27, 0
      %p96 = por %p94, %p95
      %s98 = sadd.s32 %s97, 1
      %p101 = scmp.eq.s32.totalorder %s21, 1
      %p102 = scmp.ne.s32.totalorder %s97, %s99
      %p103 = scmp.eq.s32.totalorder %s21, 0
      %p104 = por %p102, %p103
      %p105 = scmp.ne.s32.totalorder %s97, %s99
      %p106 = scmp.eq.s32.totalorder %s26, 1
      %p107 = por %p105, %p106
      %p108 = scmp.ne.s32.totalorder %s99, %s100
      %p109 = scmp.eq.s32.totalorder %s26, 0
      %p110 = por %p108, %p109
      %p111 = scmp.ne.s32.totalorder %s99, %s100
      %p112 = scmp.eq.s32.totalorder %s27, 1
      %p113 = por %p111, %p112
      %p115 = scmp.ne.s32.totalorder %s100, %s114
      %p116 = scmp.eq.s32.totalorder %s27, 0
      %p117 = por %p115, %p116
      %s119 = sadd.s32 %s118, 1
      %p122 = scmp.eq.s32.totalorder %s21, 1
      %p123 = scmp.ne.s32.totalorder %s118, %s120
      %p124 = scmp.eq.s32.totalorder %s21, 0
      %p125 = por %p123, %p124
      %p126 = scmp.ne.s32.totalorder %s118, %s120
      %p127 = scmp.eq.s32.totalorder %s26, 1
      %p128 = por %p126, %p127
      %p129 = scmp.ne.s32.totalorder %s120, %s121
      %p130 = scmp.eq.s32.totalorder %s26, 0
      %p131 = por %p129, %p130
      %p132 = scmp.ne.s32.totalorder %s120, %s121
      %p133 = scmp.eq.s32.totalorder %s27, 1
      %p134 = por %p132, %p133
      %p136 = scmp.ne.s32.totalorder %s121, %s135
      %p137 = scmp.eq.s32.totalorder %s27, 0
      %p138 = por %p136, %p137
      %s140 = sadd.s32 %s139, 1
      %p143 = scmp.eq.s32.totalorder %s21, 1
      %p144 = scmp.ne.s32.totalorder %s139, %s141
      %p145 = scmp.eq.s32.totalorder %s21, 0
      %p146 = por %p144, %p145
      %p147 = scmp.ne.s32.totalorder %s139, %s141
      %p148 = scmp.eq.s32.totalorder %s26, 1
      %p149 = por %p147, %p148
      %p150 = scmp.ne.s32.totalorder %s141, %s142
      %p151 = scmp.eq.s32.totalorder %s26, 0
      %p152 = por %p150, %p151
      %p153 = scmp.ne.s32.totalorder %s141, %s142
      %p154 = scmp.eq.s32.totalorder %s27, 1
      %p155 = por %p153, %p154
      %p157 = scmp.ne.s32.totalorder %s142, %s156
      %p158 = scmp.eq.s32.totalorder %s27, 0
      %p159 = por %p157, %p158
      %s161 = sadd.s32 %s160, 1
      %p164 = scmp.eq.s32.totalorder %s21, 1
      %p165 = scmp.ne.s32.totalorder %s160, %s162
      %p166 = scmp.eq.s32.totalorder %s21, 0
      %p167 = por %p165, %p166
      %p168 = scmp.ne.s32.totalorder %s160, %s162
      %p169 = scmp.eq.s32.totalorder %s26, 1
      %p170 = por %p168, %p169
      %p171 = scmp.ne.s32.totalorder %s162, %s163
      %p172 = scmp.eq.s32.totalorder %s26, 0
      %p173 = por %p171, %p172
      %p174 = scmp.ne.s32.totalorder %s162, %s163
      %p175 = scmp.eq.s32.totalorder %s27, 1
      %p176 = por %p174, %p175
      %p178 = scmp.ne.s32.totalorder %s163, %s177
      %p179 = scmp.eq.s32.totalorder %s27, 0
      %p180 = por %p178, %p179
      %s181 = ssub.s32 %s21, %s28
      %p182 = scmp.eq.s32.totalorder %s181, 0
      %s184 = sadd.s32 %s183, 1
      %s185 = scalar_select %p182, %s183, %s184
      %p188 = pneg %p182
      %p189 = scmp.eq.s32.totalorder %s21, 1
      %p190 = por %p188, %p189
      %p191 = scmp.ne.s32.totalorder %s183, %s186
      %p192 = scmp.eq.s32.totalorder %s21, 0
      %p193 = por %p191, %p192
      %p194 = scmp.ne.s32.totalorder %s183, %s186
      %p195 = scmp.eq.s32.totalorder %s26, 1
      %p196 = por %p194, %p195
      %p197 = scmp.ne.s32.totalorder %s186, %s187
      %p198 = scmp.eq.s32.totalorder %s26, 0
      %p199 = por %p197, %p198
      %p200 = scmp.ne.s32.totalorder %s186, %s187
      %p201 = scmp.eq.s32.totalorder %s27, 1
      %p202 = por %p200, %p201
      %p204 = scmp.ne.s32.totalorder %s187, %s203
      %p205 = scmp.eq.s32.totalorder %s27, 0
      %p206 = por %p204, %p205
      %p207 = scmp.le.s32.totalorder 1, %s21
      %p208 = scmp.lt.s32.totalorder %s21, 3
      %p209 = pnand %p207, %p208
      %p210 = pneg %p209
      // Predicated region
      $region9: #{tpu_custom_call.1} parent=5 // pred_check
        _
      $region10: #{tpu_custom_call.1} parent=5 // pred_check_branch
        %212 = sbr.rel (%p209) target = $region12
      $region11: #{tpu_custom_call.1} parent=5 // pred_region
        %s213 = ssub.s32 %s21, 1
        // Predicated region
        $region13: #{tpu_custom_call.1} parent=11 // pred_check
          %p214 = pneg %p68
        $region14: #{tpu_custom_call.1} parent=11 // pred_check_branch
          %216 = sbr.rel (%p214) target = $region16
        $region15: #{tpu_custom_call.1} parent=11 // pred_region
          %s218 = ssub.s32 2048, 2048
          %219 = vsyncadd [#allocation7], %s218
          %s220 = sshll.u32 [#allocation6], 4
          %s221 = int_to_ptr.vmem [resolvable:$true] %s220
          %226 = dma.hbm_to_vmem [thread:$0]  %s1, 2048, %s221, [#allocation7], 128, 128, 8
        $region16: #{tpu_custom_call.1} parent=11 // pred_fallthru
          _
        // Predicated region
        $region17: #{tpu_custom_call.1} parent=11 // pred_check
          %p227 = pneg %p89
        $region18: #{tpu_custom_call.1} parent=11 // pred_check_branch
          %229 = sbr.rel (%p227) target = $region20
        $region19: #{tpu_custom_call.1} parent=11 // pred_region
          _
        $region20: #{tpu_custom_call.1} parent=11 // pred_fallthru
          _
        // Predicated region
        $region21: #{tpu_custom_call.1} parent=11 // pred_check
          %p230 = pneg %p110
        $region22: #{tpu_custom_call.1} parent=11 // pred_check_branch
          %232 = sbr.rel (%p230) target = $region24
        $region23: #{tpu_custom_call.1} parent=11 // pred_region
          %s234 = ssub.s32 256, 256
          %235 = vsyncadd [#allocation7], %s234
          %s236 = sshll.u32 [#allocation8], 4
          %s237 = int_to_ptr.vmem [resolvable:$true] %s236
          %242 = dma.hbm_to_vmem [thread:$0]  %s3, 256, %s237, [#allocation7], 128, 128, 8
        $region24: #{tpu_custom_call.1} parent=11 // pred_fallthru
          _
        // Predicated region
        $region25: #{tpu_custom_call.1} parent=11 // pred_check
          %p243 = pneg %p131
        $region26: #{tpu_custom_call.1} parent=11 // pred_check_branch
          %245 = sbr.rel (%p243) target = $region28
        $region27: #{tpu_custom_call.1} parent=11 // pred_region
          _
        $region28: #{tpu_custom_call.1} parent=11 // pred_fallthru
          _
        // Predicated region
        $region29: #{tpu_custom_call.1} parent=11 // pred_check
          %p246 = pneg %p152
        $region30: #{tpu_custom_call.1} parent=11 // pred_check_branch
          %248 = sbr.rel (%p246) target = $region32
        $region31: #{tpu_custom_call.1} parent=11 // pred_region
          %s250 = ssub.s32 2048, 2048
          %251 = vsyncadd [#allocation10], %s250
          %s252 = sshll.u32 [#allocation9], 4
          %s253 = int_to_ptr.vmem [resolvable:$true] %s252
          %258 = dma.hbm_to_vmem [thread:$0]  %s5, 2048, %s253, [#allocation10], 128, 128, 8
        $region32: #{tpu_custom_call.1} parent=11 // pred_fallthru
          _
        // Predicated region
        $region33: #{tpu_custom_call.1} parent=11 // pred_check
          %p259 = pneg %p173
        $region34: #{tpu_custom_call.1} parent=11 // pred_check_branch
          %261 = sbr.rel (%p259) target = $region36
        $region35: #{tpu_custom_call.1} parent=11 // pred_region
          _
        $region36: #{tpu_custom_call.1} parent=11 // pred_fallthru
          _
      $region12: #{tpu_custom_call.1} parent=5 // pred_fallthru
        _
      %p262 = scmp.lt.s32.totalorder %s21, 2
      // Predicated region
      $region37: #{tpu_custom_call.1} parent=5 // pred_check
        %p263 = pneg %p262
      $region38: #{tpu_custom_call.1} parent=5 // pred_check_branch
        %265 = sbr.rel (%p263) target = $region40
      $region39: #{tpu_custom_call.1} parent=5 // pred_region
        // Predicated region
        $region41: #{tpu_custom_call.1} parent=39 // pred_check
          %p266 = pneg %p41
        $region42: #{tpu_custom_call.1} parent=39 // pred_check_branch
          %268 = sbr.rel (%p266) target = $region44
        $region43: #{tpu_custom_call.1} parent=39 // pred_region
          %s269 = sand.u32 %s31, 1
          %s270 = scalar_lea.sflag [#allocation4], %s269
          %s271 = sand.u32 %s31, 1
          %s272 = smul.addr %s271, 256
          %s273 = scalar_lea.vmem [#allocation3], %s272
          %s275 = ssub.s32 4096, 4096
          %276 = vsyncadd %s270, %s275
          %s277 = smul.addr %s21, 32
          %s278 = smul.addr %s277, 128
          %s279 = scalar_lea.hbm %s0, %s278
          %s280 = sshll.u32 %s273, 4
          %s281 = int_to_ptr.vmem [resolvable:$true] %s280
          %286 = dma.hbm_to_vmem [thread:$0]  %s279, 4096, %s281, %s270, 128, 128, 8
        $region44: #{tpu_custom_call.1} parent=39 // pred_fallthru
          _
      $region40: #{tpu_custom_call.1} parent=5 // pred_fallthru
        _
      %p287 = scmp.le.s32.totalorder 1, %s21
      %p288 = scmp.lt.s32.totalorder %s21, 3
      %p289 = pnand %p287, %p288
      %p290 = pneg %p289
      // Predicated region
      $region45: #{tpu_custom_call.1} parent=5 // pred_check
        _
      $region46: #{tpu_custom_call.1} parent=5 // pred_check_branch
        %292 = sbr.rel (%p289) target = $region48
      $region47: #{tpu_custom_call.1} parent=5 // pred_region
        %s293 = ssub.s32 %s21, 1
        %s294 = sand.u32 %s34, 1
        %s295 = scalar_lea.sflag [#allocation4], %s294
        %s296 = sand.u32 %s34, 1
        %s297 = smul.addr %s296, 256
        %s298 = scalar_lea.vmem [#allocation3], %s297
        // Predicated region
        $region49: #{tpu_custom_call.1} parent=47 // pred_check
          %p299 = pneg %p47
        $region50: #{tpu_custom_call.1} parent=47 // pred_check_branch
          %301 = sbr.rel (%p299) target = $region52
        $region51: #{tpu_custom_call.1} parent=47 // pred_region
          %302 = dma.done %s295, 4096
        $region52: #{tpu_custom_call.1} parent=47 // pred_fallthru
          _
        // Predicated region
        $region53: #{tpu_custom_call.1} parent=47 // pred_check
          %p303 = pneg %p68
        $region54: #{tpu_custom_call.1} parent=47 // pred_check_branch
          %305 = sbr.rel (%p303) target = $region56
        $region55: #{tpu_custom_call.1} parent=47 // pred_region
          %306 = dma.done [#allocation7], 2048
        $region56: #{tpu_custom_call.1} parent=47 // pred_fallthru
          _
        // Predicated region
        $region57: #{tpu_custom_call.1} parent=47 // pred_check
          %p307 = pneg %p110
        $region58: #{tpu_custom_call.1} parent=47 // pred_check_branch
          %309 = sbr.rel (%p307) target = $region60
        $region59: #{tpu_custom_call.1} parent=47 // pred_region
          %310 = dma.done [#allocation7], 256
        $region60: #{tpu_custom_call.1} parent=47 // pred_fallthru
          _
        // Predicated region
        $region61: #{tpu_custom_call.1} parent=47 // pred_check
          %p311 = pneg %p152
        $region62: #{tpu_custom_call.1} parent=47 // pred_check_branch
          %313 = sbr.rel (%p311) target = $region64
        $region63: #{tpu_custom_call.1} parent=47 // pred_region
          %314 = dma.done [#allocation10], 2048
        $region64: #{tpu_custom_call.1} parent=47 // pred_fallthru
          _
        %s315 = sand.u32 %s34, 1
        %s316 = scalar_lea.sflag [#allocation4], %s315
        %s317 = sand.u32 %s34, 1
        %s318 = smul.addr %s317, 256
        %s319 = scalar_lea.vmem [#allocation3], %s318
        %p320 = pneg %p47
        %p321 = pneg %p44
        %p322 = pneg %p68
        %p323 = pneg %p65
        %p324 = pneg %p89
        %p325 = pneg %p86
        %p326 = pneg %p110
        %p327 = pneg %p107
        %p328 = pneg %p131
        %p329 = pneg %p128
        %p330 = pneg %p152
        %p331 = pneg %p149
        %p332 = pneg %p173
        %p333 = pneg %p170
        %p334 = pneg %p199
        %p335 = pneg %p196
        %s336 = sand.u32 %s186, 1
        %s337 = scalar_lea.sflag [#allocation5], %s336
        %s338 = sand.u32 %s186, 1
        %s339 = smul.addr %s338, 256
        %s340 = scalar_lea.vmem [#allocation11], %s339
        %v341 = vld [vmem:[%s298] sm:$0xff]
        %v342 = vld [vmem:[%s298 + $0x8] sm:$0xff]
        %v343 = vld [vmem:[%s298 + $0x10] sm:$0xff]
        %v344 = vld [vmem:[%s298 + $0x18] sm:$0xff]
        %v345 = vld [vmem:[%s298 + $0x20] sm:$0xff]
        %v346 = vld [vmem:[%s298 + $0x28] sm:$0xff]
        %v347 = vld [vmem:[%s298 + $0x30] sm:$0xff]
        %v348 = vld [vmem:[%s298 + $0x38] sm:$0xff]
        %v349 = vld [vmem:[%s298 + $0x40] sm:$0xff]
        %v350 = vld [vmem:[%s298 + $0x48] sm:$0xff]
        %v351 = vld [vmem:[%s298 + $0x50] sm:$0xff]
        %v352 = vld [vmem:[%s298 + $0x58] sm:$0xff]
        %v353 = vld [vmem:[%s298 + $0x60] sm:$0xff]
        %v354 = vld [vmem:[%s298 + $0x68] sm:$0xff]
        %v355 = vld [vmem:[%s298 + $0x70] sm:$0xff]
        %v356 = vld [vmem:[%s298 + $0x78] sm:$0xff]
        %v357 = vld [vmem:[%s298 + $0x80] sm:$0xff]
        %v358 = vld [vmem:[%s298 + $0x88] sm:$0xff]
        %v359 = vld [vmem:[%s298 + $0x90] sm:$0xff]
        %v360 = vld [vmem:[%s298 + $0x98] sm:$0xff]
        %v361 = vld [vmem:[%s298 + $0xa0] sm:$0xff]
        %v362 = vld [vmem:[%s298 + $0xa8] sm:$0xff]
        %v363 = vld [vmem:[%s298 + $0xb0] sm:$0xff]
        %v364 = vld [vmem:[%s298 + $0xb8] sm:$0xff]
        %v365 = vld [vmem:[%s298 + $0xc0] sm:$0xff]
        %v366 = vld [vmem:[%s298 + $0xc8] sm:$0xff]
        %v367 = vld [vmem:[%s298 + $0xd0] sm:$0xff]
        %v368 = vld [vmem:[%s298 + $0xd8] sm:$0xff]
        %v369 = vld [vmem:[%s298 + $0xe0] sm:$0xff]
        %v370 = vld [vmem:[%s298 + $0xe8] sm:$0xff]
        %v371 = vld [vmem:[%s298 + $0xf0] sm:$0xff]
        %v372 = vld [vmem:[%s298 + $0xf8] sm:$0xff]
        %v373 = vld [vmem:[#allocation6] sm:$0xff]
        %v374 = vld [vmem:[#allocation6 + $0x8] sm:$0xff]
        %v375 = vld [vmem:[#allocation6 + $0x10] sm:$0xff]
        %v376 = vld [vmem:[#allocation6 + $0x18] sm:$0xff]
        %v377 = vld [vmem:[#allocation6 + $0x20] sm:$0xff]
        %v378 = vld [vmem:[#allocation6 + $0x28] sm:$0xff]
        %v379 = vld [vmem:[#allocation6 + $0x30] sm:$0xff]
        %v380 = vld [vmem:[#allocation6 + $0x38] sm:$0xff]
        %v381 = vld [vmem:[#allocation6 + $0x40] sm:$0xff]
        %v382 = vld [vmem:[#allocation6 + $0x48] sm:$0xff]
        %v383 = vld [vmem:[#allocation6 + $0x50] sm:$0xff]
        %v384 = vld [vmem:[#allocation6 + $0x58] sm:$0xff]
        %v385 = vld [vmem:[#allocation6 + $0x60] sm:$0xff]
        %v386 = vld [vmem:[#allocation6 + $0x68] sm:$0xff]
        %v387 = vld [vmem:[#allocation6 + $0x70] sm:$0xff]
        %v388 = vld [vmem:[#allocation6 + $0x78] sm:$0xff]
        %v389 = vld [vmem:[%s2] sm:$0x1]
        %v391 = vlaneseq
        %v392 = vshrl.u32 %v391, 7
        %v393 = vsub.s32 0, %v392
        %v394 = vrot.slane %v389, %v393
        %396 = vmatprep.subr.mxu0 0.0
        %397 = vmatpush1.msra.mxu0 %v373
        %398 = vmatprep.subr.mxu0 0.0
        %399 = vmatpush1.msra.mxu0 %v374
        %400 = vmatprep.subr.mxu0 0.0
        %401 = vmatpush1.msra.mxu0 %v375
        %402 = vmatprep.subr.mxu0 0.0
        %403 = vmatpush1.msra.mxu0 %v376
        %404 = vmatprep.subr.mxu0 0.0
        %405 = vmatpush1.msra.mxu0 %v377
        %406 = vmatprep.subr.mxu0 0.0
        %407 = vmatpush1.msra.mxu0 %v378
        %408 = vmatprep.subr.mxu0 0.0
        %409 = vmatpush1.msra.mxu0 %v379
        %410 = vmatprep.subr.mxu0 0.0
        %411 = vmatpush1.msra.mxu0 %v380
        %412 = vmatprep.subr.mxu0 0.0
        %413 = vmatpush1.msra.mxu0 %v381
        %414 = vmatprep.subr.mxu0 0.0
        %415 = vmatpush1.msra.mxu0 %v382
        %416 = vmatprep.subr.mxu0 0.0
        %417 = vmatpush1.msra.mxu0 %v383
        %418 = vmatprep.subr.mxu0 0.0
        %419 = vmatpush1.msra.mxu0 %v384
        %420 = vmatprep.subr.mxu0 0.0
        %421 = vmatpush1.msra.mxu0 %v385
        %422 = vmatprep.subr.mxu0 0.0
        %423 = vmatpush1.msra.mxu0 %v386
        %424 = vmatprep.subr.mxu0 0.0
        %425 = vmatpush1.msra.mxu0 %v387
        %426 = vmatprep.subr.mxu0 0.0
        %427 = vmatpush1.msra.mxu0 %v388
        %428 = vmatprep.subr.mxu0 0.0
        %429 = vmatpush1.msra.mxu0 0.0
        %430 = vmatprep.subr.mxu0 0.0
        %431 = vmatpush1.msra.mxu0 0.0
        %432 = vmatprep.subr.mxu0 0.0
        %433 = vmatpush1.msra.mxu0 0.0
        %434 = vmatprep.subr.mxu0 0.0
        %435 = vmatpush1.msra.mxu0 0.0
        %436 = vmatprep.subr.mxu0 0.0
        %437 = vmatpush1.msra.mxu0 0.0
        %438 = vmatprep.subr.mxu0 0.0
        %439 = vmatpush1.msra.mxu0 0.0
        %440 = vmatprep.subr.mxu0 0.0
        %441 = vmatpush1.msra.mxu0 0.0
        %442 = vmatprep.subr.mxu0 0.0
        %443 = vmatpush1.msra.mxu0 0.0
        %444 = vmatprep.subr.mxu0 0.0
        %445 = vmatpush1.msra.mxu0 0.0
        %446 = vmatprep.subr.mxu0 0.0
        %447 = vmatpush1.msra.mxu0 0.0
        %448 = vmatprep.subr.mxu0 0.0
        %449 = vmatpush1.msra.mxu0 0.0
        %450 = vmatprep.subr.mxu0 0.0
        %451 = vmatpush1.msra.mxu0 0.0
        %452 = vmatprep.subr.mxu0 0.0
        %453 = vmatpush1.msra.mxu0 0.0
        %454 = vmatprep.subr.mxu0 0.0
        %455 = vmatpush1.msra.mxu0 0.0
        %456 = vmatprep.subr.mxu0 0.0
        %457 = vmatpush1.msra.mxu0 0.0
        %458 = vmatprep.subr.mxu0 0.0
        %459 = vmatpush1.msra.mxu0 0.0
        %460 = vmatprep.mubr.f32.mxu0 0.0
        %461 = vmatmul.mubr.f32.gmra.mrb[0].mxu0 %v341
        %v462 = vpop.f32.mrb[0].mxu0
        %v463 = vadd.f32 %v394, %v462
        %v464 = vpop.f32.mrb[0].mxu0
        %465 = vmatprep.mubr.f32.mxu0 0.0
        %466 = vmatmul.mubr.f32.gmra.mrb[0].mxu0 %v342
        %v467 = vpop.f32.mrb[0].mxu0
        %v468 = vadd.f32 %v394, %v467
        %v469 = vpop.f32.mrb[0].mxu0
        %470 = vmatprep.mubr.f32.mxu0 0.0
        %471 = vmatmul.mubr.f32.gmra.mrb[0].mxu0 %v343
        %v472 = vpop.f32.mrb[0].mxu0
        %v473 = vadd.f32 %v394, %v472
        %v474 = vpop.f32.mrb[0].mxu0
        %475 = vmatprep.mubr.f32.mxu0 0.0
        %476 = vmatmul.mubr.f32.gmra.mrb[0].mxu0 %v344
        %v477 = vpop.f32.mrb[0].mxu0
        %v478 = vadd.f32 %v394, %v477
        %v479 = vpop.f32.mrb[0].mxu0
        %480 = vmatprep.mubr.f32.mxu0 0.0
        %481 = vmatmul.mubr.f32.gmra.mrb[0].mxu0 %v345
        %v482 = vpop.f32.mrb[0].mxu0
        %v483 = vadd.f32 %v394, %v482
        %v484 = vpop.f32.mrb[0].mxu0
        %485 = vmatprep.mubr.f32.mxu0 0.0
        %486 = vmatmul.mubr.f32.gmra.mrb[0].mxu0 %v346
        %v487 = vpop.f32.mrb[0].mxu0
        %v488 = vadd.f32 %v394, %v487
        %v489 = vpop.f32.mrb[0].mxu0
        %490 = vmatprep.mubr.f32.mxu0 0.0
        %491 = vmatmul.mubr.f32.gmra.mrb[0].mxu0 %v347
        %v492 = vpop.f32.mrb[0].mxu0
        %v493 = vadd.f32 %v394, %v492
        %v494 = vpop.f32.mrb[0].mxu0
        %495 = vmatprep.mubr.f32.mxu0 0.0
        %496 = vmatmul.mubr.f32.gmra.mrb[0].mxu0 %v348
        %v497 = vpop.f32.mrb[0].mxu0
        %v498 = vadd.f32 %v394, %v497
        %v499 = vpop.f32.mrb[0].mxu0
        %500 = vmatprep.mubr.f32.mxu0 0.0
        %501 = vmatmul.mubr.f32.gmra.mrb[0].mxu0 %v349
        %v502 = vpop.f32.mrb[0].mxu0
        %v503 = vadd.f32 %v394, %v502
        %v504 = vpop.f32.mrb[0].mxu0
        %505 = vmatprep.mubr.f32.mxu0 0.0
        %506 = vmatmul.mubr.f32.gmra.mrb[0].mxu0 %v350
        %v507 = vpop.f32.mrb[0].mxu0
        %v508 = vadd.f32 %v394, %v507
        %v509 = vpop.f32.mrb[0].mxu0
        %510 = vmatprep.mubr.f32.mxu0 0.0
        %511 = vmatmul.mubr.f32.gmra.mrb[0].mxu0 %v351
        %v512 = vpop.f32.mrb[0].mxu0
        %v513 = vadd.f32 %v394, %v512
        %v514 = vpop.f32.mrb[0].mxu0
        %515 = vmatprep.mubr.f32.mxu0 0.0
        %516 = vmatmul.mubr.f32.gmra.mrb[0].mxu0 %v352
        %v517 = vpop.f32.mrb[0].mxu0
        %v518 = vadd.f32 %v394, %v517
        %v519 = vpop.f32.mrb[0].mxu0
        %520 = vmatprep.mubr.f32.mxu0 0.0
        %521 = vmatmul.mubr.f32.gmra.mrb[0].mxu0 %v353
        %v522 = vpop.f32.mrb[0].mxu0
        %v523 = vadd.f32 %v394, %v522
        %v524 = vpop.f32.mrb[0].mxu0
        %525 = vmatprep.mubr.f32.mxu0 0.0
        %526 = vmatmul.mubr.f32.gmra.mrb[0].mxu0 %v354
        %v527 = vpop.f32.mrb[0].mxu0
        %v528 = vadd.f32 %v394, %v527
        %v529 = vpop.f32.mrb[0].mxu0
        %530 = vmatprep.mubr.f32.mxu0 0.0
        %531 = vmatmul.mubr.f32.gmra.mrb[0].mxu0 %v355
        %v532 = vpop.f32.mrb[0].mxu0
        %v533 = vadd.f32 %v394, %v532
        %v534 = vpop.f32.mrb[0].mxu0
        %535 = vmatprep.mubr.f32.mxu0 0.0
        %536 = vmatmul.mubr.f32.gmra.mrb[0].mxu0 %v356
        %v537 = vpop.f32.mrb[0].mxu0
        %v538 = vadd.f32 %v394, %v537
        %v539 = vpop.f32.mrb[0].mxu0
        %540 = vmatprep.mubr.f32.mxu0 0.0
        %541 = vmatmul.mubr.f32.gmra.mrb[0].mxu0 %v357
        %v542 = vpop.f32.mrb[0].mxu0
        %v543 = vadd.f32 %v394, %v542
        %v544 = vpop.f32.mrb[0].mxu0
        %545 = vmatprep.mubr.f32.mxu0 0.0
        %546 = vmatmul.mubr.f32.gmra.mrb[0].mxu0 %v358
        %v547 = vpop.f32.mrb[0].mxu0
        %v548 = vadd.f32 %v394, %v547
        %v549 = vpop.f32.mrb[0].mxu0
        %550 = vmatprep.mubr.f32.mxu0 0.0
        %551 = vmatmul.mubr.f32.gmra.mrb[0].mxu0 %v359
        %v552 = vpop.f32.mrb[0].mxu0
        %v553 = vadd.f32 %v394, %v552
        %v554 = vpop.f32.mrb[0].mxu0
        %555 = vmatprep.mubr.f32.mxu0 0.0
        %556 = vmatmul.mubr.f32.gmra.mrb[0].mxu0 %v360
        %v557 = vpop.f32.mrb[0].mxu0
        %v558 = vadd.f32 %v394, %v557
        %v559 = vpop.f32.mrb[0].mxu0
        %560 = vmatprep.mubr.f32.mxu0 0.0
        %561 = vmatmul.mubr.f32.gmra.mrb[0].mxu0 %v361
        %v562 = vpop.f32.mrb[0].mxu0
        %v563 = vadd.f32 %v394, %v562
        %v564 = vpop.f32.mrb[0].mxu0
        %565 = vmatprep.mubr.f32.mxu0 0.0
        %566 = vmatmul.mubr.f32.gmra.mrb[0].mxu0 %v362
        %v567 = vpop.f32.mrb[0].mxu0
        %v568 = vadd.f32 %v394, %v567
        %v569 = vpop.f32.mrb[0].mxu0
        %570 = vmatprep.mubr.f32.mxu0 0.0
        %571 = vmatmul.mubr.f32.gmra.mrb[0].mxu0 %v363
        %v572 = vpop.f32.mrb[0].mxu0
        %v573 = vadd.f32 %v394, %v572
        %v574 = vpop.f32.mrb[0].mxu0
        %575 = vmatprep.mubr.f32.mxu0 0.0
        %576 = vmatmul.mubr.f32.gmra.mrb[0].mxu0 %v364
        %v577 = vpop.f32.mrb[0].mxu0
        %v578 = vadd.f32 %v394, %v577
        %v579 = vpop.f32.mrb[0].mxu0
        %580 = vmatprep.mubr.f32.mxu0 0.0
        %581 = vmatmul.mubr.f32.gmra.mrb[0].mxu0 %v365
        %v582 = vpop.f32.mrb[0].mxu0
        %v583 = vadd.f32 %v394, %v582
        %v584 = vpop.f32.mrb[0].mxu0
        %585 = vmatprep.mubr.f32.mxu0 0.0
        %586 = vmatmul.mubr.f32.gmra.mrb[0].mxu0 %v366
        %v587 = vpop.f32.mrb[0].mxu0
        %v588 = vadd.f32 %v394, %v587
        %v589 = vpop.f32.mrb[0].mxu0
        %590 = vmatprep.mubr.f32.mxu0 0.0
        %591 = vmatmul.mubr.f32.gmra.mrb[0].mxu0 %v367
        %v592 = vpop.f32.mrb[0].mxu0
        %v593 = vadd.f32 %v394, %v592
        %v594 = vpop.f32.mrb[0].mxu0
        %595 = vmatprep.mubr.f32.mxu0 0.0
        %596 = vmatmul.mubr.f32.gmra.mrb[0].mxu0 %v368
        %v597 = vpop.f32.mrb[0].mxu0
        %v598 = vadd.f32 %v394, %v597
        %v599 = vpop.f32.mrb[0].mxu0
        %600 = vmatprep.mubr.f32.mxu0 0.0
        %601 = vmatmul.mubr.f32.gmra.mrb[0].mxu0 %v369
        %v602 = vpop.f32.mrb[0].mxu0
        %v603 = vadd.f32 %v394, %v602
        %v604 = vpop.f32.mrb[0].mxu0
        %605 = vmatprep.mubr.f32.mxu0 0.0
        %606 = vmatmul.mubr.f32.gmra.mrb[0].mxu0 %v370
        %v607 = vpop.f32.mrb[0].mxu0
        %v608 = vadd.f32 %v394, %v607
        %v609 = vpop.f32.mrb[0].mxu0
        %610 = vmatprep.mubr.f32.mxu0 0.0
        %611 = vmatmul.mubr.f32.gmra.mrb[0].mxu0 %v371
        %v612 = vpop.f32.mrb[0].mxu0
        %v613 = vadd.f32 %v394, %v612
        %v614 = vpop.f32.mrb[0].mxu0
        %615 = vmatprep.mubr.f32.mxu0 0.0
        %616 = vmatmul.mubr.f32.gmra.mrb[0].mxu0 %v372
        %v617 = vpop.f32.mrb[0].mxu0
        %v618 = vadd.f32 %v394, %v617
        %v619 = vpop.f32.mrb[0].mxu0
        %620 = vdwg.mxu0
        %v621 = vmax.f32 %v463, 0.0
        %v622 = vmax.f32 %v468, 0.0
        %v623 = vmax.f32 %v473, 0.0
        %v624 = vmax.f32 %v478, 0.0
        %v625 = vmax.f32 %v483, 0.0
        %v626 = vmax.f32 %v488, 0.0
        %v627 = vmax.f32 %v493, 0.0
        %v628 = vmax.f32 %v498, 0.0
        %v629 = vmax.f32 %v503, 0.0
        %v630 = vmax.f32 %v508, 0.0
        %v631 = vmax.f32 %v513, 0.0
        %v632 = vmax.f32 %v518, 0.0
        %v633 = vmax.f32 %v523, 0.0
        %v634 = vmax.f32 %v528, 0.0
        %v635 = vmax.f32 %v533, 0.0
        %v636 = vmax.f32 %v538, 0.0
        %v637 = vmax.f32 %v543, 0.0
        %v638 = vmax.f32 %v548, 0.0
        %v639 = vmax.f32 %v553, 0.0
        %v640 = vmax.f32 %v558, 0.0
        %v641 = vmax.f32 %v563, 0.0
        %v642 = vmax.f32 %v568, 0.0
        %v643 = vmax.f32 %v573, 0.0
        %v644 = vmax.f32 %v578, 0.0
        %v645 = vmax.f32 %v583, 0.0
        %v646 = vmax.f32 %v588, 0.0
        %v647 = vmax.f32 %v593, 0.0
        %v648 = vmax.f32 %v598, 0.0
        %v649 = vmax.f32 %v603, 0.0
        %v650 = vmax.f32 %v608, 0.0
        %v651 = vmax.f32 %v613, 0.0
        %v652 = vmax.f32 %v618, 0.0
        %v653 = vmin.f32 %v621, 6.0
        %v654 = vmin.f32 %v622, 6.0
        %v655 = vmin.f32 %v623, 6.0
        %v656 = vmin.f32 %v624, 6.0
        %v657 = vmin.f32 %v625, 6.0
        %v658 = vmin.f32 %v626, 6.0
        %v659 = vmin.f32 %v627, 6.0
        %v660 = vmin.f32 %v628, 6.0
        %v661 = vmin.f32 %v629, 6.0
        %v662 = vmin.f32 %v630, 6.0
        %v663 = vmin.f32 %v631, 6.0
        %v664 = vmin.f32 %v632, 6.0
        %v665 = vmin.f32 %v633, 6.0
        %v666 = vmin.f32 %v634, 6.0
        %v667 = vmin.f32 %v635, 6.0
        %v668 = vmin.f32 %v636, 6.0
        %v669 = vmin.f32 %v637, 6.0
        %v670 = vmin.f32 %v638, 6.0
        %v671 = vmin.f32 %v639, 6.0
        %v672 = vmin.f32 %v640, 6.0
        %v673 = vmin.f32 %v641, 6.0
        %v674 = vmin.f32 %v642, 6.0
        %v675 = vmin.f32 %v643, 6.0
        %v676 = vmin.f32 %v644, 6.0
        %v677 = vmin.f32 %v645, 6.0
        %v678 = vmin.f32 %v646, 6.0
        %v679 = vmin.f32 %v647, 6.0
        %v680 = vmin.f32 %v648, 6.0
        %v681 = vmin.f32 %v649, 6.0
        %v682 = vmin.f32 %v650, 6.0
        %v683 = vmin.f32 %v651, 6.0
        %v684 = vmin.f32 %v652, 6.0
        %s685 = scalar_lea.vmem [#allocation2], 48
        %686 = vst [vmem:[%s685 + $0x10] sm:$0xff] %v653
        %687 = vst [vmem:[%s685 + $0x18] sm:$0xff] %v654
        %688 = vst [vmem:[%s685 + $0x40] sm:$0xff] %v655
        %689 = vst [vmem:[%s685 + $0x48] sm:$0xff] %v656
        %690 = vst [vmem:[%s685 + $0x70] sm:$0xff] %v657
        %691 = vst [vmem:[%s685 + $0x78] sm:$0xff] %v658
        %692 = vst [vmem:[%s685 + $0xa0] sm:$0xff] %v659
        %693 = vst [vmem:[%s685 + $0xa8] sm:$0xff] %v660
        %694 = vst [vmem:[%s685 + $0xd0] sm:$0xff] %v661
        %695 = vst [vmem:[%s685 + $0xd8] sm:$0xff] %v662
        %696 = vst [vmem:[%s685 + $0x100] sm:$0xff] %v663
        %697 = vst [vmem:[%s685 + $0x108] sm:$0xff] %v664
        %698 = vst [vmem:[%s685 + $0x130] sm:$0xff] %v665
        %699 = vst [vmem:[%s685 + $0x138] sm:$0xff] %v666
        %700 = vst [vmem:[%s685 + $0x160] sm:$0xff] %v667
        %701 = vst [vmem:[%s685 + $0x168] sm:$0xff] %v668
        %702 = vst [vmem:[%s685 + $0x190] sm:$0xff] %v669
        %703 = vst [vmem:[%s685 + $0x198] sm:$0xff] %v670
        %704 = vst [vmem:[%s685 + $0x1c0] sm:$0xff] %v671
        %705 = vst [vmem:[%s685 + $0x1c8] sm:$0xff] %v672
        %706 = vst [vmem:[%s685 + $0x1f0] sm:$0xff] %v673
        %707 = vst [vmem:[%s685 + $0x1f8] sm:$0xff] %v674
        %708 = vst [vmem:[%s685 + $0x220] sm:$0xff] %v675
        %709 = vst [vmem:[%s685 + $0x228] sm:$0xff] %v676
        %710 = vst [vmem:[%s685 + $0x250] sm:$0xff] %v677
        %711 = vst [vmem:[%s685 + $0x258] sm:$0xff] %v678
        %712 = vst [vmem:[%s685 + $0x280] sm:$0xff] %v679
        %713 = vst [vmem:[%s685 + $0x288] sm:$0xff] %v680
        %714 = vst [vmem:[%s685 + $0x2b0] sm:$0xff] %v681
        %715 = vst [vmem:[%s685 + $0x2b8] sm:$0xff] %v682
        %716 = vst [vmem:[%s685 + $0x2e0] sm:$0xff] %v683
        %717 = vst [vmem:[%s685 + $0x2e8] sm:$0xff] %v684
        %718 = vst [vmem:[#allocation2] sm:$0xff] 0.0
        %719 = vst [vmem:[#allocation2 + $0x8] sm:$0xff] 0.0
        %720 = vst [vmem:[#allocation2 + $0x10] sm:$0xff] 0.0
        %721 = vst [vmem:[#allocation2 + $0x18] sm:$0xff] 0.0
        %722 = vst [vmem:[#allocation2 + $0x20] sm:$0xff] 0.0
        %723 = vst [vmem:[#allocation2 + $0x28] sm:$0xff] 0.0
        %s724 = scalar_lea.vmem [#allocation2], 816
        %725 = vst [vmem:[%s724] sm:$0xff] 0.0
        %726 = vst [vmem:[%s724 + $0x8] sm:$0xff] 0.0
        %727 = vst [vmem:[%s724 + $0x10] sm:$0xff] 0.0
        %728 = vst [vmem:[%s724 + $0x18] sm:$0xff] 0.0
        %729 = vst [vmem:[%s724 + $0x20] sm:$0xff] 0.0
        %730 = vst [vmem:[%s724 + $0x28] sm:$0xff] 0.0
        %731 = vst [vmem:[%s685 + $0xf] sm:$0x1] 0.0
        %732 = vst [vmem:[%s685 + $0x3f] sm:$0x1] 0.0
        %733 = vst [vmem:[%s685 + $0x6f] sm:$0x1] 0.0
        %734 = vst [vmem:[%s685 + $0x9f] sm:$0x1] 0.0
        %735 = vst [vmem:[%s685 + $0xcf] sm:$0x1] 0.0
        %736 = vst [vmem:[%s685 + $0xff] sm:$0x1] 0.0
        %737 = vst [vmem:[%s685 + $0x12f] sm:$0x1] 0.0
        %738 = vst [vmem:[%s685 + $0x15f] sm:$0x1] 0.0
        %739 = vst [vmem:[%s685 + $0x18f] sm:$0x1] 0.0
        %740 = vst [vmem:[%s685 + $0x1bf] sm:$0x1] 0.0
        %741 = vst [vmem:[%s685 + $0x1ef] sm:$0x1] 0.0
        %742 = vst [vmem:[%s685 + $0x21f] sm:$0x1] 0.0
        %743 = vst [vmem:[%s685 + $0x24f] sm:$0x1] 0.0
        %744 = vst [vmem:[%s685 + $0x27f] sm:$0x1] 0.0
        %745 = vst [vmem:[%s685 + $0x2af] sm:$0x1] 0.0
        %746 = vst [vmem:[%s685 + $0x2df] sm:$0x1] 0.0
        %747 = vst [vmem:[%s685 + $0x20] sm:$0x1] 0.0
        %748 = vst [vmem:[%s685 + $0x50] sm:$0x1] 0.0
        %749 = vst [vmem:[%s685 + $0x80] sm:$0x1] 0.0
        %750 = vst [vmem:[%s685 + $0xb0] sm:$0x1] 0.0
        %751 = vst [vmem:[%s685 + $0xe0] sm:$0x1] 0.0
        %752 = vst [vmem:[%s685 + $0x110] sm:$0x1] 0.0
        %753 = vst [vmem:[%s685 + $0x140] sm:$0x1] 0.0
        %754 = vst [vmem:[%s685 + $0x170] sm:$0x1] 0.0
        %755 = vst [vmem:[%s685 + $0x1a0] sm:$0x1] 0.0
        %756 = vst [vmem:[%s685 + $0x1d0] sm:$0x1] 0.0
        %757 = vst [vmem:[%s685 + $0x200] sm:$0x1] 0.0
        %758 = vst [vmem:[%s685 + $0x230] sm:$0x1] 0.0
        %759 = vst [vmem:[%s685 + $0x260] sm:$0x1] 0.0
        %760 = vst [vmem:[%s685 + $0x290] sm:$0x1] 0.0
        %761 = vst [vmem:[%s685 + $0x2c0] sm:$0x1] 0.0
        %762 = vst [vmem:[%s685 + $0x2f0] sm:$0x1] 0.0
        %v763 = vld [vmem:[#allocation8] sm:$0xff]
        %v764 = vld [vmem:[#allocation8 + $0x8] sm:$0x1]
        %v765 = vld [vmem:[%s4] sm:$0x1]
        %v766 = vld [vmem:[#allocation2 + $0xf] sm:$0xff]
        %v767 = vld [vmem:[#allocation2 + $0x17] sm:$0xff]
        %v768 = vld [vmem:[#allocation2 + $0x3f] sm:$0xff]
        %v769 = vld [vmem:[#allocation2 + $0x47] sm:$0xff]
        %v770 = vld [vmem:[#allocation2 + $0x6f] sm:$0xff]
        %v771 = vld [vmem:[#allocation2 + $0x77] sm:$0xff]
        %v772 = vld [vmem:[#allocation2 + $0x9f] sm:$0xff]
        %v773 = vld [vmem:[#allocation2 + $0xa7] sm:$0xff]
        %v774 = vld [vmem:[#allocation2 + $0xcf] sm:$0xff]
        %v775 = vld [vmem:[#allocation2 + $0xd7] sm:$0xff]
        %v776 = vld [vmem:[#allocation2 + $0xff] sm:$0xff]
        %v777 = vld [vmem:[#allocation2 + $0x107] sm:$0xff]
        %v778 = vld [vmem:[#allocation2 + $0x12f] sm:$0xff]
        %v779 = vld [vmem:[#allocation2 + $0x137] sm:$0xff]
        %v780 = vld [vmem:[#allocation2 + $0x15f] sm:$0xff]
        %v781 = vld [vmem:[#allocation2 + $0x167] sm:$0xff]
        %v782 = vld [vmem:[#allocation2 + $0x18f] sm:$0xff]
        %v783 = vld [vmem:[#allocation2 + $0x197] sm:$0xff]
        %v784 = vld [vmem:[#allocation2 + $0x1bf] sm:$0xff]
        %v785 = vld [vmem:[#allocation2 + $0x1c7] sm:$0xff]
        %v786 = vld [vmem:[#allocation2 + $0x1ef] sm:$0xff]
        %v787 = vld [vmem:[#allocation2 + $0x1f7] sm:$0xff]
        %v788 = vld [vmem:[#allocation2 + $0x21f] sm:$0xff]
        %v789 = vld [vmem:[#allocation2 + $0x227] sm:$0xff]
        %v790 = vld [vmem:[#allocation2 + $0x24f] sm:$0xff]
        %v791 = vld [vmem:[#allocation2 + $0x257] sm:$0xff]
        %v792 = vld [vmem:[#allocation2 + $0x27f] sm:$0xff]
        %v793 = vld [vmem:[#allocation2 + $0x287] sm:$0xff]
        %v794 = vld [vmem:[#allocation2 + $0x2af] sm:$0xff]
        %v795 = vld [vmem:[#allocation2 + $0x2b7] sm:$0xff]
        %v796 = vld [vmem:[#allocation2 + $0x2df] sm:$0xff]
        %v797 = vld [vmem:[#allocation2 + $0x2e7] sm:$0xff]
        %v798 = vlaneseq
        %v799 = vshrl.u32 %v798, 7
        %v800 = vsub.s32 0, %v799
        %v801 = vrot.slane %v763, %v800
        %v802 = vmul.f32 %v766, %v801
        %v803 = vmul.f32 %v767, %v801
        %v804 = vmul.f32 %v768, %v801
        %v805 = vmul.f32 %v769, %v801
        %v806 = vmul.f32 %v770, %v801
        %v807 = vmul.f32 %v771, %v801
        %v808 = vmul.f32 %v772, %v801
        %v809 = vmul.f32 %v773, %v801
        %v810 = vmul.f32 %v774, %v801
        %v811 = vmul.f32 %v775, %v801
        %v812 = vmul.f32 %v776, %v801
        %v813 = vmul.f32 %v777, %v801
        %v814 = vmul.f32 %v778, %v801
        %v815 = vmul.f32 %v779, %v801
        %v816 = vmul.f32 %v780, %v801
        %v817 = vmul.f32 %v781, %v801
        %v818 = vmul.f32 %v782, %v801
        %v819 = vmul.f32 %v783, %v801
        %v820 = vmul.f32 %v784, %v801
        %v821 = vmul.f32 %v785, %v801
        %v822 = vmul.f32 %v786, %v801
        %v823 = vmul.f32 %v787, %v801
        %v824 = vmul.f32 %v788, %v801
        %v825 = vmul.f32 %v789, %v801
        %v826 = vmul.f32 %v790, %v801
        %v827 = vmul.f32 %v791, %v801
        %v828 = vmul.f32 %v792, %v801
        %v829 = vmul.f32 %v793, %v801
        %v830 = vmul.f32 %v794, %v801
        %v831 = vmul.f32 %v795, %v801
        %v832 = vmul.f32 %v796, %v801
        %v833 = vmul.f32 %v797, %v801
        %v835 = vlaneseq
        %v836 = vshrl.u32 %v835, 7
        %v837 = vsub.s32 0, %v836
        %v838 = vrot.slane %v765, %v837
        %v840 = vadd.f32 %v802, %v838
        %v841 = vadd.f32 %v803, %v838
        %v842 = vadd.f32 %v804, %v838
        %v843 = vadd.f32 %v805, %v838
        %v844 = vadd.f32 %v806, %v838
        %v845 = vadd.f32 %v807, %v838
        %v846 = vadd.f32 %v808, %v838
        %v847 = vadd.f32 %v809, %v838
        %v848 = vadd.f32 %v810, %v838
        %v849 = vadd.f32 %v811, %v838
        %v850 = vadd.f32 %v812, %v838
        %v851 = vadd.f32 %v813, %v838
        %v852 = vadd.f32 %v814, %v838
        %v853 = vadd.f32 %v815, %v838
        %v854 = vadd.f32 %v816, %v838
        %v855 = vadd.f32 %v817, %v838
        %v856 = vadd.f32 %v818, %v838
        %v857 = vadd.f32 %v819, %v838
        %v858 = vadd.f32 %v820, %v838
        %v859 = vadd.f32 %v821, %v838
        %v860 = vadd.f32 %v822, %v838
        %v861 = vadd.f32 %v823, %v838
        %v862 = vadd.f32 %v824, %v838
        %v863 = vadd.f32 %v825, %v838
        %v864 = vadd.f32 %v826, %v838
        %v865 = vadd.f32 %v827, %v838
        %v866 = vadd.f32 %v828, %v838
        %v867 = vadd.f32 %v829, %v838
        %v868 = vadd.f32 %v830, %v838
        %v869 = vadd.f32 %v831, %v838
        %v870 = vadd.f32 %v832, %v838
        %v871 = vadd.f32 %v833, %v838
        %v872 = vld [vmem:[#allocation2 + $0x10] sm:$0xff]
        %v873 = vld [vmem:[#allocation2 + $0x18] sm:$0xff]
        %v874 = vld [vmem:[#allocation2 + $0x40] sm:$0xff]
        %v875 = vld [vmem:[#allocation2 + $0x48] sm:$0xff]
        %v876 = vld [vmem:[#allocation2 + $0x70] sm:$0xff]
        %v877 = vld [vmem:[#allocation2 + $0x78] sm:$0xff]
        %v878 = vld [vmem:[#allocation2 + $0xa0] sm:$0xff]
        %v879 = vld [vmem:[#allocation2 + $0xa8] sm:$0xff]
        %v880 = vld [vmem:[#allocation2 + $0xd0] sm:$0xff]
        %v881 = vld [vmem:[#allocation2 + $0xd8] sm:$0xff]
        %v882 = vld [vmem:[#allocation2 + $0x100] sm:$0xff]
        %v883 = vld [vmem:[#allocation2 + $0x108] sm:$0xff]
        %v884 = vld [vmem:[#allocation2 + $0x130] sm:$0xff]
        %v885 = vld [vmem:[#allocation2 + $0x138] sm:$0xff]
        %v886 = vld [vmem:[#allocation2 + $0x160] sm:$0xff]
        %v887 = vld [vmem:[#allocation2 + $0x168] sm:$0xff]
        %v888 = vld [vmem:[#allocation2 + $0x190] sm:$0xff]
        %v889 = vld [vmem:[#allocation2 + $0x198] sm:$0xff]
        %v890 = vld [vmem:[#allocation2 + $0x1c0] sm:$0xff]
        %v891 = vld [vmem:[#allocation2 + $0x1c8] sm:$0xff]
        %v892 = vld [vmem:[#allocation2 + $0x1f0] sm:$0xff]
        %v893 = vld [vmem:[#allocation2 + $0x1f8] sm:$0xff]
        %v894 = vld [vmem:[#allocation2 + $0x220] sm:$0xff]
        %v895 = vld [vmem:[#allocation2 + $0x228] sm:$0xff]
        %v896 = vld [vmem:[#allocation2 + $0x250] sm:$0xff]
        %v897 = vld [vmem:[#allocation2 + $0x258] sm:$0xff]
        %v898 = vld [vmem:[#allocation2 + $0x280] sm:$0xff]
        %v899 = vld [vmem:[#allocation2 + $0x288] sm:$0xff]
        %v900 = vld [vmem:[#allocation2 + $0x2b0] sm:$0xff]
        %v901 = vld [vmem:[#allocation2 + $0x2b8] sm:$0xff]
        %v902 = vld [vmem:[#allocation2 + $0x2e0] sm:$0xff]
        %v903 = vld [vmem:[#allocation2 + $0x2e8] sm:$0xff]
        %v904 = vlaneseq
        %v905 = vshrl.u32 %v904, 7
        %v906 = vsub.s32 1, %v905
        %v907 = vrot.slane %v763, %v906
        %v908 = vmul.f32 %v872, %v907
        %v909 = vmul.f32 %v873, %v907
        %v910 = vmul.f32 %v874, %v907
        %v911 = vmul.f32 %v875, %v907
        %v912 = vmul.f32 %v876, %v907
        %v913 = vmul.f32 %v877, %v907
        %v914 = vmul.f32 %v878, %v907
        %v915 = vmul.f32 %v879, %v907
        %v916 = vmul.f32 %v880, %v907
        %v917 = vmul.f32 %v881, %v907
        %v918 = vmul.f32 %v882, %v907
        %v919 = vmul.f32 %v883, %v907
        %v920 = vmul.f32 %v884, %v907
        %v921 = vmul.f32 %v885, %v907
        %v922 = vmul.f32 %v886, %v907
        %v923 = vmul.f32 %v887, %v907
        %v924 = vmul.f32 %v888, %v907
        %v925 = vmul.f32 %v889, %v907
        %v926 = vmul.f32 %v890, %v907
        %v927 = vmul.f32 %v891, %v907
        %v928 = vmul.f32 %v892, %v907
        %v929 = vmul.f32 %v893, %v907
        %v930 = vmul.f32 %v894, %v907
        %v931 = vmul.f32 %v895, %v907
        %v932 = vmul.f32 %v896, %v907
        %v933 = vmul.f32 %v897, %v907
        %v934 = vmul.f32 %v898, %v907
        %v935 = vmul.f32 %v899, %v907
        %v936 = vmul.f32 %v900, %v907
        %v937 = vmul.f32 %v901, %v907
        %v938 = vmul.f32 %v902, %v907
        %v939 = vmul.f32 %v903, %v907
        %v940 = vadd.f32 %v840, %v908
        %v941 = vadd.f32 %v841, %v909
        %v942 = vadd.f32 %v842, %v910
        %v943 = vadd.f32 %v843, %v911
        %v944 = vadd.f32 %v844, %v912
        %v945 = vadd.f32 %v845, %v913
        %v946 = vadd.f32 %v846, %v914
        %v947 = vadd.f32 %v847, %v915
        %v948 = vadd.f32 %v848, %v916
        %v949 = vadd.f32 %v849, %v917
        %v950 = vadd.f32 %v850, %v918
        %v951 = vadd.f32 %v851, %v919
        %v952 = vadd.f32 %v852, %v920
        %v953 = vadd.f32 %v853, %v921
        %v954 = vadd.f32 %v854, %v922
        %v955 = vadd.f32 %v855, %v923
        %v956 = vadd.f32 %v856, %v924
        %v957 = vadd.f32 %v857, %v925
        %v958 = vadd.f32 %v858, %v926
        %v959 = vadd.f32 %v859, %v927
        %v960 = vadd.f32 %v860, %v928
        %v961 = vadd.f32 %v861, %v929
        %v962 = vadd.f32 %v862, %v930
        %v963 = vadd.f32 %v863, %v931
        %v964 = vadd.f32 %v864, %v932
        %v965 = vadd.f32 %v865, %v933
        %v966 = vadd.f32 %v866, %v934
        %v967 = vadd.f32 %v867, %v935
        %v968 = vadd.f32 %v868, %v936
        %v969 = vadd.f32 %v869, %v937
        %v970 = vadd.f32 %v870, %v938
        %v971 = vadd.f32 %v871, %v939
        %v972 = vld [vmem:[#allocation2 + $0x11] sm:$0xff]
        %v973 = vld [vmem:[#allocation2 + $0x19] sm:$0xff]
        %v974 = vld [vmem:[#allocation2 + $0x41] sm:$0xff]
        %v975 = vld [vmem:[#allocation2 + $0x49] sm:$0xff]
        %v976 = vld [vmem:[#allocation2 + $0x71] sm:$0xff]
        %v977 = vld [vmem:[#allocation2 + $0x79] sm:$0xff]
        %v978 = vld [vmem:[#allocation2 + $0xa1] sm:$0xff]
        %v979 = vld [vmem:[#allocation2 + $0xa9] sm:$0xff]
        %v980 = vld [vmem:[#allocation2 + $0xd1] sm:$0xff]
        %v981 = vld [vmem:[#allocation2 + $0xd9] sm:$0xff]
        %v982 = vld [vmem:[#allocation2 + $0x101] sm:$0xff]
        %v983 = vld [vmem:[#allocation2 + $0x109] sm:$0xff]
        %v984 = vld [vmem:[#allocation2 + $0x131] sm:$0xff]
        %v985 = vld [vmem:[#allocation2 + $0x139] sm:$0xff]
        %v986 = vld [vmem:[#allocation2 + $0x161] sm:$0xff]
        %v987 = vld [vmem:[#allocation2 + $0x169] sm:$0xff]
        %v988 = vld [vmem:[#allocation2 + $0x191] sm:$0xff]
        %v989 = vld [vmem:[#allocation2 + $0x199] sm:$0xff]
        %v990 = vld [vmem:[#allocation2 + $0x1c1] sm:$0xff]
        %v991 = vld [vmem:[#allocation2 + $0x1c9] sm:$0xff]
        %v992 = vld [vmem:[#allocation2 + $0x1f1] sm:$0xff]
        %v993 = vld [vmem:[#allocation2 + $0x1f9] sm:$0xff]
        %v994 = vld [vmem:[#allocation2 + $0x221] sm:$0xff]
        %v995 = vld [vmem:[#allocation2 + $0x229] sm:$0xff]
        %v996 = vld [vmem:[#allocation2 + $0x251] sm:$0xff]
        %v997 = vld [vmem:[#allocation2 + $0x259] sm:$0xff]
        %v998 = vld [vmem:[#allocation2 + $0x281] sm:$0xff]
        %v999 = vld [vmem:[#allocation2 + $0x289] sm:$0xff]
        %v1000 = vld [vmem:[#allocation2 + $0x2b1] sm:$0xff]
        %v1001 = vld [vmem:[#allocation2 + $0x2b9] sm:$0xff]
        %v1002 = vld [vmem:[#allocation2 + $0x2e1] sm:$0xff]
        %v1003 = vld [vmem:[#allocation2 + $0x2e9] sm:$0xff]
        %v1004 = vlaneseq
        %v1005 = vshrl.u32 %v1004, 7
        %v1006 = vsub.s32 2, %v1005
        %v1007 = vrot.slane %v763, %v1006
        %v1008 = vmul.f32 %v972, %v1007
        %v1009 = vmul.f32 %v973, %v1007
        %v1010 = vmul.f32 %v974, %v1007
        %v1011 = vmul.f32 %v975, %v1007
        %v1012 = vmul.f32 %v976, %v1007
        %v1013 = vmul.f32 %v977, %v1007
        %v1014 = vmul.f32 %v978, %v1007
        %v1015 = vmul.f32 %v979, %v1007
        %v1016 = vmul.f32 %v980, %v1007
        %v1017 = vmul.f32 %v981, %v1007
        %v1018 = vmul.f32 %v982, %v1007
        %v1019 = vmul.f32 %v983, %v1007
        %v1020 = vmul.f32 %v984, %v1007
        %v1021 = vmul.f32 %v985, %v1007
        %v1022 = vmul.f32 %v986, %v1007
        %v1023 = vmul.f32 %v987, %v1007
        %v1024 = vmul.f32 %v988, %v1007
        %v1025 = vmul.f32 %v989, %v1007
        %v1026 = vmul.f32 %v990, %v1007
        %v1027 = vmul.f32 %v991, %v1007
        %v1028 = vmul.f32 %v992, %v1007
        %v1029 = vmul.f32 %v993, %v1007
        %v1030 = vmul.f32 %v994, %v1007
        %v1031 = vmul.f32 %v995, %v1007
        %v1032 = vmul.f32 %v996, %v1007
        %v1033 = vmul.f32 %v997, %v1007
        %v1034 = vmul.f32 %v998, %v1007
        %v1035 = vmul.f32 %v999, %v1007
        %v1036 = vmul.f32 %v1000, %v1007
        %v1037 = vmul.f32 %v1001, %v1007
        %v1038 = vmul.f32 %v1002, %v1007
        %v1039 = vmul.f32 %v1003, %v1007
        %v1040 = vadd.f32 %v940, %v1008
        %v1041 = vadd.f32 %v941, %v1009
        %v1042 = vadd.f32 %v942, %v1010
        %v1043 = vadd.f32 %v943, %v1011
        %v1044 = vadd.f32 %v944, %v1012
        %v1045 = vadd.f32 %v945, %v1013
        %v1046 = vadd.f32 %v946, %v1014
        %v1047 = vadd.f32 %v947, %v1015
        %v1048 = vadd.f32 %v948, %v1016
        %v1049 = vadd.f32 %v949, %v1017
        %v1050 = vadd.f32 %v950, %v1018
        %v1051 = vadd.f32 %v951, %v1019
        %v1052 = vadd.f32 %v952, %v1020
        %v1053 = vadd.f32 %v953, %v1021
        %v1054 = vadd.f32 %v954, %v1022
        %v1055 = vadd.f32 %v955, %v1023
        %v1056 = vadd.f32 %v956, %v1024
        %v1057 = vadd.f32 %v957, %v1025
        %v1058 = vadd.f32 %v958, %v1026
        %v1059 = vadd.f32 %v959, %v1027
        %v1060 = vadd.f32 %v960, %v1028
        %v1061 = vadd.f32 %v961, %v1029
        %v1062 = vadd.f32 %v962, %v1030
        %v1063 = vadd.f32 %v963, %v1031
        %v1064 = vadd.f32 %v964, %v1032
        %v1065 = vadd.f32 %v965, %v1033
        %v1066 = vadd.f32 %v966, %v1034
        %v1067 = vadd.f32 %v967, %v1035
        %v1068 = vadd.f32 %v968, %v1036
        %v1069 = vadd.f32 %v969, %v1037
        %v1070 = vadd.f32 %v970, %v1038
        %v1071 = vadd.f32 %v971, %v1039
        %v1072 = vld [vmem:[%s685 + $0xf] sm:$0xff]
        %v1073 = vld [vmem:[%s685 + $0x17] sm:$0xff]
        %v1074 = vld [vmem:[%s685 + $0x3f] sm:$0xff]
        %v1075 = vld [vmem:[%s685 + $0x47] sm:$0xff]
        %v1076 = vld [vmem:[%s685 + $0x6f] sm:$0xff]
        %v1077 = vld [vmem:[%s685 + $0x77] sm:$0xff]
        %v1078 = vld [vmem:[%s685 + $0x9f] sm:$0xff]
        %v1079 = vld [vmem:[%s685 + $0xa7] sm:$0xff]
        %v1080 = vld [vmem:[%s685 + $0xcf] sm:$0xff]
        %v1081 = vld [vmem:[%s685 + $0xd7] sm:$0xff]
        %v1082 = vld [vmem:[%s685 + $0xff] sm:$0xff]
        %v1083 = vld [vmem:[%s685 + $0x107] sm:$0xff]
        %v1084 = vld [vmem:[%s685 + $0x12f] sm:$0xff]
        %v1085 = vld [vmem:[%s685 + $0x137] sm:$0xff]
        %v1086 = vld [vmem:[%s685 + $0x15f] sm:$0xff]
        %v1087 = vld [vmem:[%s685 + $0x167] sm:$0xff]
        %v1088 = vld [vmem:[%s685 + $0x18f] sm:$0xff]
        %v1089 = vld [vmem:[%s685 + $0x197] sm:$0xff]
        %v1090 = vld [vmem:[%s685 + $0x1bf] sm:$0xff]
        %v1091 = vld [vmem:[%s685 + $0x1c7] sm:$0xff]
        %v1092 = vld [vmem:[%s685 + $0x1ef] sm:$0xff]
        %v1093 = vld [vmem:[%s685 + $0x1f7] sm:$0xff]
        %v1094 = vld [vmem:[%s685 + $0x21f] sm:$0xff]
        %v1095 = vld [vmem:[%s685 + $0x227] sm:$0xff]
        %v1096 = vld [vmem:[%s685 + $0x24f] sm:$0xff]
        %v1097 = vld [vmem:[%s685 + $0x257] sm:$0xff]
        %v1098 = vld [vmem:[%s685 + $0x27f] sm:$0xff]
        %v1099 = vld [vmem:[%s685 + $0x287] sm:$0xff]
        %v1100 = vld [vmem:[%s685 + $0x2af] sm:$0xff]
        %v1101 = vld [vmem:[%s685 + $0x2b7] sm:$0xff]
        %v1102 = vld [vmem:[%s685 + $0x2df] sm:$0xff]
        %v1103 = vld [vmem:[%s685 + $0x2e7] sm:$0xff]
        %v1104 = vlaneseq
        %v1105 = vshrl.u32 %v1104, 7
        %v1106 = vsub.s32 3, %v1105
        %v1107 = vrot.slane %v763, %v1106
        %v1108 = vmul.f32 %v1072, %v1107
        %v1109 = vmul.f32 %v1073, %v1107
        %v1110 = vmul.f32 %v1074, %v1107
        %v1111 = vmul.f32 %v1075, %v1107
        %v1112 = vmul.f32 %v1076, %v1107
        %v1113 = vmul.f32 %v1077, %v1107
        %v1114 = vmul.f32 %v1078, %v1107
        %v1115 = vmul.f32 %v1079, %v1107
        %v1116 = vmul.f32 %v1080, %v1107
        %v1117 = vmul.f32 %v1081, %v1107
        %v1118 = vmul.f32 %v1082, %v1107
        %v1119 = vmul.f32 %v1083, %v1107
        %v1120 = vmul.f32 %v1084, %v1107
        %v1121 = vmul.f32 %v1085, %v1107
        %v1122 = vmul.f32 %v1086, %v1107
        %v1123 = vmul.f32 %v1087, %v1107
        %v1124 = vmul.f32 %v1088, %v1107
        %v1125 = vmul.f32 %v1089, %v1107
        %v1126 = vmul.f32 %v1090, %v1107
        %v1127 = vmul.f32 %v1091, %v1107
        %v1128 = vmul.f32 %v1092, %v1107
        %v1129 = vmul.f32 %v1093, %v1107
        %v1130 = vmul.f32 %v1094, %v1107
        %v1131 = vmul.f32 %v1095, %v1107
        %v1132 = vmul.f32 %v1096, %v1107
        %v1133 = vmul.f32 %v1097, %v1107
        %v1134 = vmul.f32 %v1098, %v1107
        %v1135 = vmul.f32 %v1099, %v1107
        %v1136 = vmul.f32 %v1100, %v1107
        %v1137 = vmul.f32 %v1101, %v1107
        %v1138 = vmul.f32 %v1102, %v1107
        %v1139 = vmul.f32 %v1103, %v1107
        %v1140 = vadd.f32 %v1040, %v1108
        %v1141 = vadd.f32 %v1041, %v1109
        %v1142 = vadd.f32 %v1042, %v1110
        %v1143 = vadd.f32 %v1043, %v1111
        %v1144 = vadd.f32 %v1044, %v1112
        %v1145 = vadd.f32 %v1045, %v1113
        %v1146 = vadd.f32 %v1046, %v1114
        %v1147 = vadd.f32 %v1047, %v1115
        %v1148 = vadd.f32 %v1048, %v1116
        %v1149 = vadd.f32 %v1049, %v1117
        %v1150 = vadd.f32 %v1050, %v1118
        %v1151 = vadd.f32 %v1051, %v1119
        %v1152 = vadd.f32 %v1052, %v1120
        %v1153 = vadd.f32 %v1053, %v1121
        %v1154 = vadd.f32 %v1054, %v1122
        %v1155 = vadd.f32 %v1055, %v1123
        %v1156 = vadd.f32 %v1056, %v1124
        %v1157 = vadd.f32 %v1057, %v1125
        %v1158 = vadd.f32 %v1058, %v1126
        %v1159 = vadd.f32 %v1059, %v1127
        %v1160 = vadd.f32 %v1060, %v1128
        %v1161 = vadd.f32 %v1061, %v1129
        %v1162 = vadd.f32 %v1062, %v1130
        %v1163 = vadd.f32 %v1063, %v1131
        %v1164 = vadd.f32 %v1064, %v1132
        %v1165 = vadd.f32 %v1065, %v1133
        %v1166 = vadd.f32 %v1066, %v1134
        %v1167 = vadd.f32 %v1067, %v1135
        %v1168 = vadd.f32 %v1068, %v1136
        %v1169 = vadd.f32 %v1069, %v1137
        %v1170 = vadd.f32 %v1070, %v1138
        %v1171 = vadd.f32 %v1071, %v1139
        %v1172 = vld [vmem:[%s685 + $0x10] sm:$0xff]
        %v1173 = vld [vmem:[%s685 + $0x18] sm:$0xff]
        %v1174 = vld [vmem:[%s685 + $0x40] sm:$0xff]
        %v1175 = vld [vmem:[%s685 + $0x48] sm:$0xff]
        %v1176 = vld [vmem:[%s685 + $0x70] sm:$0xff]
        %v1177 = vld [vmem:[%s685 + $0x78] sm:$0xff]
        %v1178 = vld [vmem:[%s685 + $0xa0] sm:$0xff]
        %v1179 = vld [vmem:[%s685 + $0xa8] sm:$0xff]
        %v1180 = vld [vmem:[%s685 + $0xd0] sm:$0xff]
        %v1181 = vld [vmem:[%s685 + $0xd8] sm:$0xff]
        %v1182 = vld [vmem:[%s685 + $0x100] sm:$0xff]
        %v1183 = vld [vmem:[%s685 + $0x108] sm:$0xff]
        %v1184 = vld [vmem:[%s685 + $0x130] sm:$0xff]
        %v1185 = vld [vmem:[%s685 + $0x138] sm:$0xff]
        %v1186 = vld [vmem:[%s685 + $0x160] sm:$0xff]
        %v1187 = vld [vmem:[%s685 + $0x168] sm:$0xff]
        %v1188 = vld [vmem:[%s685 + $0x190] sm:$0xff]
        %v1189 = vld [vmem:[%s685 + $0x198] sm:$0xff]
        %v1190 = vld [vmem:[%s685 + $0x1c0] sm:$0xff]
        %v1191 = vld [vmem:[%s685 + $0x1c8] sm:$0xff]
        %v1192 = vld [vmem:[%s685 + $0x1f0] sm:$0xff]
        %v1193 = vld [vmem:[%s685 + $0x1f8] sm:$0xff]
        %v1194 = vld [vmem:[%s685 + $0x220] sm:$0xff]
        %v1195 = vld [vmem:[%s685 + $0x228] sm:$0xff]
        %v1196 = vld [vmem:[%s685 + $0x250] sm:$0xff]
        %v1197 = vld [vmem:[%s685 + $0x258] sm:$0xff]
        %v1198 = vld [vmem:[%s685 + $0x280] sm:$0xff]
        %v1199 = vld [vmem:[%s685 + $0x288] sm:$0xff]
        %v1200 = vld [vmem:[%s685 + $0x2b0] sm:$0xff]
        %v1201 = vld [vmem:[%s685 + $0x2b8] sm:$0xff]
        %v1202 = vld [vmem:[%s685 + $0x2e0] sm:$0xff]
        %v1203 = vld [vmem:[%s685 + $0x2e8] sm:$0xff]
        %v1204 = vlaneseq
        %v1205 = vshrl.u32 %v1204, 7
        %v1206 = vsub.s32 4, %v1205
        %v1207 = vrot.slane %v763, %v1206
        %v1208 = vmul.f32 %v1172, %v1207
        %v1209 = vmul.f32 %v1173, %v1207
        %v1210 = vmul.f32 %v1174, %v1207
        %v1211 = vmul.f32 %v1175, %v1207
        %v1212 = vmul.f32 %v1176, %v1207
        %v1213 = vmul.f32 %v1177, %v1207
        %v1214 = vmul.f32 %v1178, %v1207
        %v1215 = vmul.f32 %v1179, %v1207
        %v1216 = vmul.f32 %v1180, %v1207
        %v1217 = vmul.f32 %v1181, %v1207
        %v1218 = vmul.f32 %v1182, %v1207
        %v1219 = vmul.f32 %v1183, %v1207
        %v1220 = vmul.f32 %v1184, %v1207
        %v1221 = vmul.f32 %v1185, %v1207
        %v1222 = vmul.f32 %v1186, %v1207
        %v1223 = vmul.f32 %v1187, %v1207
        %v1224 = vmul.f32 %v1188, %v1207
        %v1225 = vmul.f32 %v1189, %v1207
        %v1226 = vmul.f32 %v1190, %v1207
        %v1227 = vmul.f32 %v1191, %v1207
        %v1228 = vmul.f32 %v1192, %v1207
        %v1229 = vmul.f32 %v1193, %v1207
        %v1230 = vmul.f32 %v1194, %v1207
        %v1231 = vmul.f32 %v1195, %v1207
        %v1232 = vmul.f32 %v1196, %v1207
        %v1233 = vmul.f32 %v1197, %v1207
        %v1234 = vmul.f32 %v1198, %v1207
        %v1235 = vmul.f32 %v1199, %v1207
        %v1236 = vmul.f32 %v1200, %v1207
        %v1237 = vmul.f32 %v1201, %v1207
        %v1238 = vmul.f32 %v1202, %v1207
        %v1239 = vmul.f32 %v1203, %v1207
        %v1240 = vadd.f32 %v1140, %v1208
        %v1241 = vadd.f32 %v1141, %v1209
        %v1242 = vadd.f32 %v1142, %v1210
        %v1243 = vadd.f32 %v1143, %v1211
        %v1244 = vadd.f32 %v1144, %v1212
        %v1245 = vadd.f32 %v1145, %v1213
        %v1246 = vadd.f32 %v1146, %v1214
        %v1247 = vadd.f32 %v1147, %v1215
        %v1248 = vadd.f32 %v1148, %v1216
        %v1249 = vadd.f32 %v1149, %v1217
        %v1250 = vadd.f32 %v1150, %v1218
        %v1251 = vadd.f32 %v1151, %v1219
        %v1252 = vadd.f32 %v1152, %v1220
        %v1253 = vadd.f32 %v1153, %v1221
        %v1254 = vadd.f32 %v1154, %v1222
        %v1255 = vadd.f32 %v1155, %v1223
        %v1256 = vadd.f32 %v1156, %v1224
        %v1257 = vadd.f32 %v1157, %v1225
        %v1258 = vadd.f32 %v1158, %v1226
        %v1259 = vadd.f32 %v1159, %v1227
        %v1260 = vadd.f32 %v1160, %v1228
        %v1261 = vadd.f32 %v1161, %v1229
        %v1262 = vadd.f32 %v1162, %v1230
        %v1263 = vadd.f32 %v1163, %v1231
        %v1264 = vadd.f32 %v1164, %v1232
        %v1265 = vadd.f32 %v1165, %v1233
        %v1266 = vadd.f32 %v1166, %v1234
        %v1267 = vadd.f32 %v1167, %v1235
        %v1268 = vadd.f32 %v1168, %v1236
        %v1269 = vadd.f32 %v1169, %v1237
        %v1270 = vadd.f32 %v1170, %v1238
        %v1271 = vadd.f32 %v1171, %v1239
        %v1272 = vld [vmem:[%s685 + $0x11] sm:$0xff]
        %v1273 = vld [vmem:[%s685 + $0x19] sm:$0xff]
        %v1274 = vld [vmem:[%s685 + $0x41] sm:$0xff]
        %v1275 = vld [vmem:[%s685 + $0x49] sm:$0xff]
        %v1276 = vld [vmem:[%s685 + $0x71] sm:$0xff]
        %v1277 = vld [vmem:[%s685 + $0x79] sm:$0xff]
        %v1278 = vld [vmem:[%s685 + $0xa1] sm:$0xff]
        %v1279 = vld [vmem:[%s685 + $0xa9] sm:$0xff]
        %v1280 = vld [vmem:[%s685 + $0xd1] sm:$0xff]
        %v1281 = vld [vmem:[%s685 + $0xd9] sm:$0xff]
        %v1282 = vld [vmem:[%s685 + $0x101] sm:$0xff]
        %v1283 = vld [vmem:[%s685 + $0x109] sm:$0xff]
        %v1284 = vld [vmem:[%s685 + $0x131] sm:$0xff]
        %v1285 = vld [vmem:[%s685 + $0x139] sm:$0xff]
        %v1286 = vld [vmem:[%s685 + $0x161] sm:$0xff]
        %v1287 = vld [vmem:[%s685 + $0x169] sm:$0xff]
        %v1288 = vld [vmem:[%s685 + $0x191] sm:$0xff]
        %v1289 = vld [vmem:[%s685 + $0x199] sm:$0xff]
        %v1290 = vld [vmem:[%s685 + $0x1c1] sm:$0xff]
        %v1291 = vld [vmem:[%s685 + $0x1c9] sm:$0xff]
        %v1292 = vld [vmem:[%s685 + $0x1f1] sm:$0xff]
        %v1293 = vld [vmem:[%s685 + $0x1f9] sm:$0xff]
        %v1294 = vld [vmem:[%s685 + $0x221] sm:$0xff]
        %v1295 = vld [vmem:[%s685 + $0x229] sm:$0xff]
        %v1296 = vld [vmem:[%s685 + $0x251] sm:$0xff]
        %v1297 = vld [vmem:[%s685 + $0x259] sm:$0xff]
        %v1298 = vld [vmem:[%s685 + $0x281] sm:$0xff]
        %v1299 = vld [vmem:[%s685 + $0x289] sm:$0xff]
        %v1300 = vld [vmem:[%s685 + $0x2b1] sm:$0xff]
        %v1301 = vld [vmem:[%s685 + $0x2b9] sm:$0xff]
        %v1302 = vld [vmem:[%s685 + $0x2e1] sm:$0xff]
        %v1303 = vld [vmem:[%s685 + $0x2e9] sm:$0xff]
        %v1304 = vlaneseq
        %v1305 = vshrl.u32 %v1304, 7
        %v1306 = vsub.s32 5, %v1305
        %v1307 = vrot.slane %v763, %v1306
        %v1308 = vmul.f32 %v1272, %v1307
        %v1309 = vmul.f32 %v1273, %v1307
        %v1310 = vmul.f32 %v1274, %v1307
        %v1311 = vmul.f32 %v1275, %v1307
        %v1312 = vmul.f32 %v1276, %v1307
        %v1313 = vmul.f32 %v1277, %v1307
        %v1314 = vmul.f32 %v1278, %v1307
        %v1315 = vmul.f32 %v1279, %v1307
        %v1316 = vmul.f32 %v1280, %v1307
        %v1317 = vmul.f32 %v1281, %v1307
        %v1318 = vmul.f32 %v1282, %v1307
        %v1319 = vmul.f32 %v1283, %v1307
        %v1320 = vmul.f32 %v1284, %v1307
        %v1321 = vmul.f32 %v1285, %v1307
        %v1322 = vmul.f32 %v1286, %v1307
        %v1323 = vmul.f32 %v1287, %v1307
        %v1324 = vmul.f32 %v1288, %v1307
        %v1325 = vmul.f32 %v1289, %v1307
        %v1326 = vmul.f32 %v1290, %v1307
        %v1327 = vmul.f32 %v1291, %v1307
        %v1328 = vmul.f32 %v1292, %v1307
        %v1329 = vmul.f32 %v1293, %v1307
        %v1330 = vmul.f32 %v1294, %v1307
        %v1331 = vmul.f32 %v1295, %v1307
        %v1332 = vmul.f32 %v1296, %v1307
        %v1333 = vmul.f32 %v1297, %v1307
        %v1334 = vmul.f32 %v1298, %v1307
        %v1335 = vmul.f32 %v1299, %v1307
        %v1336 = vmul.f32 %v1300, %v1307
        %v1337 = vmul.f32 %v1301, %v1307
        %v1338 = vmul.f32 %v1302, %v1307
        %v1339 = vmul.f32 %v1303, %v1307
        %v1340 = vadd.f32 %v1240, %v1308
        %v1341 = vadd.f32 %v1241, %v1309
        %v1342 = vadd.f32 %v1242, %v1310
        %v1343 = vadd.f32 %v1243, %v1311
        %v1344 = vadd.f32 %v1244, %v1312
        %v1345 = vadd.f32 %v1245, %v1313
        %v1346 = vadd.f32 %v1246, %v1314
        %v1347 = vadd.f32 %v1247, %v1315
        %v1348 = vadd.f32 %v1248, %v1316
        %v1349 = vadd.f32 %v1249, %v1317
        %v1350 = vadd.f32 %v1250, %v1318
        %v1351 = vadd.f32 %v1251, %v1319
        %v1352 = vadd.f32 %v1252, %v1320
        %v1353 = vadd.f32 %v1253, %v1321
        %v1354 = vadd.f32 %v1254, %v1322
        %v1355 = vadd.f32 %v1255, %v1323
        %v1356 = vadd.f32 %v1256, %v1324
        %v1357 = vadd.f32 %v1257, %v1325
        %v1358 = vadd.f32 %v1258, %v1326
        %v1359 = vadd.f32 %v1259, %v1327
        %v1360 = vadd.f32 %v1260, %v1328
        %v1361 = vadd.f32 %v1261, %v1329
        %v1362 = vadd.f32 %v1262, %v1330
        %v1363 = vadd.f32 %v1263, %v1331
        %v1364 = vadd.f32 %v1264, %v1332
        %v1365 = vadd.f32 %v1265, %v1333
        %v1366 = vadd.f32 %v1266, %v1334
        %v1367 = vadd.f32 %v1267, %v1335
        %v1368 = vadd.f32 %v1268, %v1336
        %v1369 = vadd.f32 %v1269, %v1337
        %v1370 = vadd.f32 %v1270, %v1338
        %v1371 = vadd.f32 %v1271, %v1339
        %s1372 = scalar_lea.vmem [#allocation2], 96
        %v1373 = vld [vmem:[%s1372 + $0xf] sm:$0xff]
        %v1374 = vld [vmem:[%s1372 + $0x17] sm:$0xff]
        %v1375 = vld [vmem:[%s1372 + $0x3f] sm:$0xff]
        %v1376 = vld [vmem:[%s1372 + $0x47] sm:$0xff]
        %v1377 = vld [vmem:[%s1372 + $0x6f] sm:$0xff]
        %v1378 = vld [vmem:[%s1372 + $0x77] sm:$0xff]
        %v1379 = vld [vmem:[%s1372 + $0x9f] sm:$0xff]
        %v1380 = vld [vmem:[%s1372 + $0xa7] sm:$0xff]
        %v1381 = vld [vmem:[%s1372 + $0xcf] sm:$0xff]
        %v1382 = vld [vmem:[%s1372 + $0xd7] sm:$0xff]
        %v1383 = vld [vmem:[%s1372 + $0xff] sm:$0xff]
        %v1384 = vld [vmem:[%s1372 + $0x107] sm:$0xff]
        %v1385 = vld [vmem:[%s1372 + $0x12f] sm:$0xff]
        %v1386 = vld [vmem:[%s1372 + $0x137] sm:$0xff]
        %v1387 = vld [vmem:[%s1372 + $0x15f] sm:$0xff]
        %v1388 = vld [vmem:[%s1372 + $0x167] sm:$0xff]
        %v1389 = vld [vmem:[%s1372 + $0x18f] sm:$0xff]
        %v1390 = vld [vmem:[%s1372 + $0x197] sm:$0xff]
        %v1391 = vld [vmem:[%s1372 + $0x1bf] sm:$0xff]
        %v1392 = vld [vmem:[%s1372 + $0x1c7] sm:$0xff]
        %v1393 = vld [vmem:[%s1372 + $0x1ef] sm:$0xff]
        %v1394 = vld [vmem:[%s1372 + $0x1f7] sm:$0xff]
        %v1395 = vld [vmem:[%s1372 + $0x21f] sm:$0xff]
        %v1396 = vld [vmem:[%s1372 + $0x227] sm:$0xff]
        %v1397 = vld [vmem:[%s1372 + $0x24f] sm:$0xff]
        %v1398 = vld [vmem:[%s1372 + $0x257] sm:$0xff]
        %v1399 = vld [vmem:[%s1372 + $0x27f] sm:$0xff]
        %v1400 = vld [vmem:[%s1372 + $0x287] sm:$0xff]
        %v1401 = vld [vmem:[%s1372 + $0x2af] sm:$0xff]
        %v1402 = vld [vmem:[%s1372 + $0x2b7] sm:$0xff]
        %v1403 = vld [vmem:[%s1372 + $0x2df] sm:$0xff]
        %v1404 = vld [vmem:[%s1372 + $0x2e7] sm:$0xff]
        %v1405 = vlaneseq
        %v1406 = vshrl.u32 %v1405, 7
        %v1407 = vsub.s32 6, %v1406
        %v1408 = vrot.slane %v763, %v1407
        %v1409 = vmul.f32 %v1373, %v1408
        %v1410 = vmul.f32 %v1374, %v1408
        %v1411 = vmul.f32 %v1375, %v1408
        %v1412 = vmul.f32 %v1376, %v1408
        %v1413 = vmul.f32 %v1377, %v1408
        %v1414 = vmul.f32 %v1378, %v1408
        %v1415 = vmul.f32 %v1379, %v1408
        %v1416 = vmul.f32 %v1380, %v1408
        %v1417 = vmul.f32 %v1381, %v1408
        %v1418 = vmul.f32 %v1382, %v1408
        %v1419 = vmul.f32 %v1383, %v1408
        %v1420 = vmul.f32 %v1384, %v1408
        %v1421 = vmul.f32 %v1385, %v1408
        %v1422 = vmul.f32 %v1386, %v1408
        %v1423 = vmul.f32 %v1387, %v1408
        %v1424 = vmul.f32 %v1388, %v1408
        %v1425 = vmul.f32 %v1389, %v1408
        %v1426 = vmul.f32 %v1390, %v1408
        %v1427 = vmul.f32 %v1391, %v1408
        %v1428 = vmul.f32 %v1392, %v1408
        %v1429 = vmul.f32 %v1393, %v1408
        %v1430 = vmul.f32 %v1394, %v1408
        %v1431 = vmul.f32 %v1395, %v1408
        %v1432 = vmul.f32 %v1396, %v1408
        %v1433 = vmul.f32 %v1397, %v1408
        %v1434 = vmul.f32 %v1398, %v1408
        %v1435 = vmul.f32 %v1399, %v1408
        %v1436 = vmul.f32 %v1400, %v1408
        %v1437 = vmul.f32 %v1401, %v1408
        %v1438 = vmul.f32 %v1402, %v1408
        %v1439 = vmul.f32 %v1403, %v1408
        %v1440 = vmul.f32 %v1404, %v1408
        %v1441 = vadd.f32 %v1340, %v1409
        %v1442 = vadd.f32 %v1341, %v1410
        %v1443 = vadd.f32 %v1342, %v1411
        %v1444 = vadd.f32 %v1343, %v1412
        %v1445 = vadd.f32 %v1344, %v1413
        %v1446 = vadd.f32 %v1345, %v1414
        %v1447 = vadd.f32 %v1346, %v1415
        %v1448 = vadd.f32 %v1347, %v1416
        %v1449 = vadd.f32 %v1348, %v1417
        %v1450 = vadd.f32 %v1349, %v1418
        %v1451 = vadd.f32 %v1350, %v1419
        %v1452 = vadd.f32 %v1351, %v1420
        %v1453 = vadd.f32 %v1352, %v1421
        %v1454 = vadd.f32 %v1353, %v1422
        %v1455 = vadd.f32 %v1354, %v1423
        %v1456 = vadd.f32 %v1355, %v1424
        %v1457 = vadd.f32 %v1356, %v1425
        %v1458 = vadd.f32 %v1357, %v1426
        %v1459 = vadd.f32 %v1358, %v1427
        %v1460 = vadd.f32 %v1359, %v1428
        %v1461 = vadd.f32 %v1360, %v1429
        %v1462 = vadd.f32 %v1361, %v1430
        %v1463 = vadd.f32 %v1362, %v1431
        %v1464 = vadd.f32 %v1363, %v1432
        %v1465 = vadd.f32 %v1364, %v1433
        %v1466 = vadd.f32 %v1365, %v1434
        %v1467 = vadd.f32 %v1366, %v1435
        %v1468 = vadd.f32 %v1367, %v1436
        %v1469 = vadd.f32 %v1368, %v1437
        %v1470 = vadd.f32 %v1369, %v1438
        %v1471 = vadd.f32 %v1370, %v1439
        %v1472 = vadd.f32 %v1371, %v1440
        %v1473 = vld [vmem:[%s1372 + $0x10] sm:$0xff]
        %v1474 = vld [vmem:[%s1372 + $0x18] sm:$0xff]
        %v1475 = vld [vmem:[%s1372 + $0x40] sm:$0xff]
        %v1476 = vld [vmem:[%s1372 + $0x48] sm:$0xff]
        %v1477 = vld [vmem:[%s1372 + $0x70] sm:$0xff]
        %v1478 = vld [vmem:[%s1372 + $0x78] sm:$0xff]
        %v1479 = vld [vmem:[%s1372 + $0xa0] sm:$0xff]
        %v1480 = vld [vmem:[%s1372 + $0xa8] sm:$0xff]
        %v1481 = vld [vmem:[%s1372 + $0xd0] sm:$0xff]
        %v1482 = vld [vmem:[%s1372 + $0xd8] sm:$0xff]
        %v1483 = vld [vmem:[%s1372 + $0x100] sm:$0xff]
        %v1484 = vld [vmem:[%s1372 + $0x108] sm:$0xff]
        %v1485 = vld [vmem:[%s1372 + $0x130] sm:$0xff]
        %v1486 = vld [vmem:[%s1372 + $0x138] sm:$0xff]
        %v1487 = vld [vmem:[%s1372 + $0x160] sm:$0xff]
        %v1488 = vld [vmem:[%s1372 + $0x168] sm:$0xff]
        %v1489 = vld [vmem:[%s1372 + $0x190] sm:$0xff]
        %v1490 = vld [vmem:[%s1372 + $0x198] sm:$0xff]
        %v1491 = vld [vmem:[%s1372 + $0x1c0] sm:$0xff]
        %v1492 = vld [vmem:[%s1372 + $0x1c8] sm:$0xff]
        %v1493 = vld [vmem:[%s1372 + $0x1f0] sm:$0xff]
        %v1494 = vld [vmem:[%s1372 + $0x1f8] sm:$0xff]
        %v1495 = vld [vmem:[%s1372 + $0x220] sm:$0xff]
        %v1496 = vld [vmem:[%s1372 + $0x228] sm:$0xff]
        %v1497 = vld [vmem:[%s1372 + $0x250] sm:$0xff]
        %v1498 = vld [vmem:[%s1372 + $0x258] sm:$0xff]
        %v1499 = vld [vmem:[%s1372 + $0x280] sm:$0xff]
        %v1500 = vld [vmem:[%s1372 + $0x288] sm:$0xff]
        %v1501 = vld [vmem:[%s1372 + $0x2b0] sm:$0xff]
        %v1502 = vld [vmem:[%s1372 + $0x2b8] sm:$0xff]
        %v1503 = vld [vmem:[%s1372 + $0x2e0] sm:$0xff]
        %v1504 = vld [vmem:[%s1372 + $0x2e8] sm:$0xff]
        %v1505 = vlaneseq
        %v1506 = vshrl.u32 %v1505, 7
        %v1507 = vsub.s32 7, %v1506
        %v1508 = vrot.slane %v763, %v1507
        %v1509 = vmul.f32 %v1473, %v1508
        %v1510 = vmul.f32 %v1474, %v1508
        %v1511 = vmul.f32 %v1475, %v1508
        %v1512 = vmul.f32 %v1476, %v1508
        %v1513 = vmul.f32 %v1477, %v1508
        %v1514 = vmul.f32 %v1478, %v1508
        %v1515 = vmul.f32 %v1479, %v1508
        %v1516 = vmul.f32 %v1480, %v1508
        %v1517 = vmul.f32 %v1481, %v1508
        %v1518 = vmul.f32 %v1482, %v1508
        %v1519 = vmul.f32 %v1483, %v1508
        %v1520 = vmul.f32 %v1484, %v1508
        %v1521 = vmul.f32 %v1485, %v1508
        %v1522 = vmul.f32 %v1486, %v1508
        %v1523 = vmul.f32 %v1487, %v1508
        %v1524 = vmul.f32 %v1488, %v1508
        %v1525 = vmul.f32 %v1489, %v1508
        %v1526 = vmul.f32 %v1490, %v1508
        %v1527 = vmul.f32 %v1491, %v1508
        %v1528 = vmul.f32 %v1492, %v1508
        %v1529 = vmul.f32 %v1493, %v1508
        %v1530 = vmul.f32 %v1494, %v1508
        %v1531 = vmul.f32 %v1495, %v1508
        %v1532 = vmul.f32 %v1496, %v1508
        %v1533 = vmul.f32 %v1497, %v1508
        %v1534 = vmul.f32 %v1498, %v1508
        %v1535 = vmul.f32 %v1499, %v1508
        %v1536 = vmul.f32 %v1500, %v1508
        %v1537 = vmul.f32 %v1501, %v1508
        %v1538 = vmul.f32 %v1502, %v1508
        %v1539 = vmul.f32 %v1503, %v1508
        %v1540 = vmul.f32 %v1504, %v1508
        %v1541 = vadd.f32 %v1441, %v1509
        %v1542 = vadd.f32 %v1442, %v1510
        %v1543 = vadd.f32 %v1443, %v1511
        %v1544 = vadd.f32 %v1444, %v1512
        %v1545 = vadd.f32 %v1445, %v1513
        %v1546 = vadd.f32 %v1446, %v1514
        %v1547 = vadd.f32 %v1447, %v1515
        %v1548 = vadd.f32 %v1448, %v1516
        %v1549 = vadd.f32 %v1449, %v1517
        %v1550 = vadd.f32 %v1450, %v1518
        %v1551 = vadd.f32 %v1451, %v1519
        %v1552 = vadd.f32 %v1452, %v1520
        %v1553 = vadd.f32 %v1453, %v1521
        %v1554 = vadd.f32 %v1454, %v1522
        %v1555 = vadd.f32 %v1455, %v1523
        %v1556 = vadd.f32 %v1456, %v1524
        %v1557 = vadd.f32 %v1457, %v1525
        %v1558 = vadd.f32 %v1458, %v1526
        %v1559 = vadd.f32 %v1459, %v1527
        %v1560 = vadd.f32 %v1460, %v1528
        %v1561 = vadd.f32 %v1461, %v1529
        %v1562 = vadd.f32 %v1462, %v1530
        %v1563 = vadd.f32 %v1463, %v1531
        %v1564 = vadd.f32 %v1464, %v1532
        %v1565 = vadd.f32 %v1465, %v1533
        %v1566 = vadd.f32 %v1466, %v1534
        %v1567 = vadd.f32 %v1467, %v1535
        %v1568 = vadd.f32 %v1468, %v1536
        %v1569 = vadd.f32 %v1469, %v1537
        %v1570 = vadd.f32 %v1470, %v1538
        %v1571 = vadd.f32 %v1471, %v1539
        %v1572 = vadd.f32 %v1472, %v1540
        %v1573 = vld [vmem:[%s1372 + $0x11] sm:$0xff]
        %v1574 = vld [vmem:[%s1372 + $0x19] sm:$0xff]
        %v1575 = vld [vmem:[%s1372 + $0x41] sm:$0xff]
        %v1576 = vld [vmem:[%s1372 + $0x49] sm:$0xff]
        %v1577 = vld [vmem:[%s1372 + $0x71] sm:$0xff]
        %v1578 = vld [vmem:[%s1372 + $0x79] sm:$0xff]
        %v1579 = vld [vmem:[%s1372 + $0xa1] sm:$0xff]
        %v1580 = vld [vmem:[%s1372 + $0xa9] sm:$0xff]
        %v1581 = vld [vmem:[%s1372 + $0xd1] sm:$0xff]
        %v1582 = vld [vmem:[%s1372 + $0xd9] sm:$0xff]
        %v1583 = vld [vmem:[%s1372 + $0x101] sm:$0xff]
        %v1584 = vld [vmem:[%s1372 + $0x109] sm:$0xff]
        %v1585 = vld [vmem:[%s1372 + $0x131] sm:$0xff]
        %v1586 = vld [vmem:[%s1372 + $0x139] sm:$0xff]
        %v1587 = vld [vmem:[%s1372 + $0x161] sm:$0xff]
        %v1588 = vld [vmem:[%s1372 + $0x169] sm:$0xff]
        %v1589 = vld [vmem:[%s1372 + $0x191] sm:$0xff]
        %v1590 = vld [vmem:[%s1372 + $0x199] sm:$0xff]
        %v1591 = vld [vmem:[%s1372 + $0x1c1] sm:$0xff]
        %v1592 = vld [vmem:[%s1372 + $0x1c9] sm:$0xff]
        %v1593 = vld [vmem:[%s1372 + $0x1f1] sm:$0xff]
        %v1594 = vld [vmem:[%s1372 + $0x1f9] sm:$0xff]
        %v1595 = vld [vmem:[%s1372 + $0x221] sm:$0xff]
        %v1596 = vld [vmem:[%s1372 + $0x229] sm:$0xff]
        %v1597 = vld [vmem:[%s1372 + $0x251] sm:$0xff]
        %v1598 = vld [vmem:[%s1372 + $0x259] sm:$0xff]
        %v1599 = vld [vmem:[%s1372 + $0x281] sm:$0xff]
        %v1600 = vld [vmem:[%s1372 + $0x289] sm:$0xff]
        %v1601 = vld [vmem:[%s1372 + $0x2b1] sm:$0xff]
        %v1602 = vld [vmem:[%s1372 + $0x2b9] sm:$0xff]
        %v1603 = vld [vmem:[%s1372 + $0x2e1] sm:$0xff]
        %v1604 = vld [vmem:[%s1372 + $0x2e9] sm:$0xff]
        %v1605 = vlaneseq
        %v1606 = vshrl.u32 %v1605, 7
        %v1607 = vsub.s32 0, %v1606
        %v1608 = vrot.slane %v764, %v1607
        %v1609 = vmul.f32 %v1573, %v1608
        %v1610 = vmul.f32 %v1574, %v1608
        %v1611 = vmul.f32 %v1575, %v1608
        %v1612 = vmul.f32 %v1576, %v1608
        %v1613 = vmul.f32 %v1577, %v1608
        %v1614 = vmul.f32 %v1578, %v1608
        %v1615 = vmul.f32 %v1579, %v1608
        %v1616 = vmul.f32 %v1580, %v1608
        %v1617 = vmul.f32 %v1581, %v1608
        %v1618 = vmul.f32 %v1582, %v1608
        %v1619 = vmul.f32 %v1583, %v1608
        %v1620 = vmul.f32 %v1584, %v1608
        %v1621 = vmul.f32 %v1585, %v1608
        %v1622 = vmul.f32 %v1586, %v1608
        %v1623 = vmul.f32 %v1587, %v1608
        %v1624 = vmul.f32 %v1588, %v1608
        %v1625 = vmul.f32 %v1589, %v1608
        %v1626 = vmul.f32 %v1590, %v1608
        %v1627 = vmul.f32 %v1591, %v1608
        %v1628 = vmul.f32 %v1592, %v1608
        %v1629 = vmul.f32 %v1593, %v1608
        %v1630 = vmul.f32 %v1594, %v1608
        %v1631 = vmul.f32 %v1595, %v1608
        %v1632 = vmul.f32 %v1596, %v1608
        %v1633 = vmul.f32 %v1597, %v1608
        %v1634 = vmul.f32 %v1598, %v1608
        %v1635 = vmul.f32 %v1599, %v1608
        %v1636 = vmul.f32 %v1600, %v1608
        %v1637 = vmul.f32 %v1601, %v1608
        %v1638 = vmul.f32 %v1602, %v1608
        %v1639 = vmul.f32 %v1603, %v1608
        %v1640 = vmul.f32 %v1604, %v1608
        %v1641 = vadd.f32 %v1541, %v1609
        %v1642 = vadd.f32 %v1542, %v1610
        %v1643 = vadd.f32 %v1543, %v1611
        %v1644 = vadd.f32 %v1544, %v1612
        %v1645 = vadd.f32 %v1545, %v1613
        %v1646 = vadd.f32 %v1546, %v1614
        %v1647 = vadd.f32 %v1547, %v1615
        %v1648 = vadd.f32 %v1548, %v1616
        %v1649 = vadd.f32 %v1549, %v1617
        %v1650 = vadd.f32 %v1550, %v1618
        %v1651 = vadd.f32 %v1551, %v1619
        %v1652 = vadd.f32 %v1552, %v1620
        %v1653 = vadd.f32 %v1553, %v1621
        %v1654 = vadd.f32 %v1554, %v1622
        %v1655 = vadd.f32 %v1555, %v1623
        %v1656 = vadd.f32 %v1556, %v1624
        %v1657 = vadd.f32 %v1557, %v1625
        %v1658 = vadd.f32 %v1558, %v1626
        %v1659 = vadd.f32 %v1559, %v1627
        %v1660 = vadd.f32 %v1560, %v1628
        %v1661 = vadd.f32 %v1561, %v1629
        %v1662 = vadd.f32 %v1562, %v1630
        %v1663 = vadd.f32 %v1563, %v1631
        %v1664 = vadd.f32 %v1564, %v1632
        %v1665 = vadd.f32 %v1565, %v1633
        %v1666 = vadd.f32 %v1566, %v1634
        %v1667 = vadd.f32 %v1567, %v1635
        %v1668 = vadd.f32 %v1568, %v1636
        %v1669 = vadd.f32 %v1569, %v1637
        %v1670 = vadd.f32 %v1570, %v1638
        %v1671 = vadd.f32 %v1571, %v1639
        %v1672 = vadd.f32 %v1572, %v1640
        %v1673 = vmax.f32 %v1641, 0.0
        %v1674 = vmax.f32 %v1642, 0.0
        %v1675 = vmax.f32 %v1643, 0.0
        %v1676 = vmax.f32 %v1644, 0.0
        %v1677 = vmax.f32 %v1645, 0.0
        %v1678 = vmax.f32 %v1646, 0.0
        %v1679 = vmax.f32 %v1647, 0.0
        %v1680 = vmax.f32 %v1648, 0.0
        %v1681 = vmax.f32 %v1649, 0.0
        %v1682 = vmax.f32 %v1650, 0.0
        %v1683 = vmax.f32 %v1651, 0.0
        %v1684 = vmax.f32 %v1652, 0.0
        %v1685 = vmax.f32 %v1653, 0.0
        %v1686 = vmax.f32 %v1654, 0.0
        %v1687 = vmax.f32 %v1655, 0.0
        %v1688 = vmax.f32 %v1656, 0.0
        %v1689 = vmax.f32 %v1657, 0.0
        %v1690 = vmax.f32 %v1658, 0.0
        %v1691 = vmax.f32 %v1659, 0.0
        %v1692 = vmax.f32 %v1660, 0.0
        %v1693 = vmax.f32 %v1661, 0.0
        %v1694 = vmax.f32 %v1662, 0.0
        %v1695 = vmax.f32 %v1663, 0.0
        %v1696 = vmax.f32 %v1664, 0.0
        %v1697 = vmax.f32 %v1665, 0.0
        %v1698 = vmax.f32 %v1666, 0.0
        %v1699 = vmax.f32 %v1667, 0.0
        %v1700 = vmax.f32 %v1668, 0.0
        %v1701 = vmax.f32 %v1669, 0.0
        %v1702 = vmax.f32 %v1670, 0.0
        %v1703 = vmax.f32 %v1671, 0.0
        %v1704 = vmax.f32 %v1672, 0.0
        %v1705 = vmin.f32 %v1673, 6.0
        %v1706 = vmin.f32 %v1674, 6.0
        %v1707 = vmin.f32 %v1675, 6.0
        %v1708 = vmin.f32 %v1676, 6.0
        %v1709 = vmin.f32 %v1677, 6.0
        %v1710 = vmin.f32 %v1678, 6.0
        %v1711 = vmin.f32 %v1679, 6.0
        %v1712 = vmin.f32 %v1680, 6.0
        %v1713 = vmin.f32 %v1681, 6.0
        %v1714 = vmin.f32 %v1682, 6.0
        %v1715 = vmin.f32 %v1683, 6.0
        %v1716 = vmin.f32 %v1684, 6.0
        %v1717 = vmin.f32 %v1685, 6.0
        %v1718 = vmin.f32 %v1686, 6.0
        %v1719 = vmin.f32 %v1687, 6.0
        %v1720 = vmin.f32 %v1688, 6.0
        %v1721 = vmin.f32 %v1689, 6.0
        %v1722 = vmin.f32 %v1690, 6.0
        %v1723 = vmin.f32 %v1691, 6.0
        %v1724 = vmin.f32 %v1692, 6.0
        %v1725 = vmin.f32 %v1693, 6.0
        %v1726 = vmin.f32 %v1694, 6.0
        %v1727 = vmin.f32 %v1695, 6.0
        %v1728 = vmin.f32 %v1696, 6.0
        %v1729 = vmin.f32 %v1697, 6.0
        %v1730 = vmin.f32 %v1698, 6.0
        %v1731 = vmin.f32 %v1699, 6.0
        %v1732 = vmin.f32 %v1700, 6.0
        %v1733 = vmin.f32 %v1701, 6.0
        %v1734 = vmin.f32 %v1702, 6.0
        %v1735 = vmin.f32 %v1703, 6.0
        %v1736 = vmin.f32 %v1704, 6.0
        %v1737 = vld [vmem:[#allocation9] sm:$0xff]
        %v1738 = vld [vmem:[#allocation9 + $0x8] sm:$0xff]
        %v1739 = vld [vmem:[#allocation9 + $0x10] sm:$0xff]
        %v1740 = vld [vmem:[#allocation9 + $0x18] sm:$0xff]
        %v1741 = vld [vmem:[#allocation9 + $0x20] sm:$0xff]
        %v1742 = vld [vmem:[#allocation9 + $0x28] sm:$0xff]
        %v1743 = vld [vmem:[#allocation9 + $0x30] sm:$0xff]
        %v1744 = vld [vmem:[#allocation9 + $0x38] sm:$0xff]
        %v1745 = vld [vmem:[#allocation9 + $0x40] sm:$0xff]
        %v1746 = vld [vmem:[#allocation9 + $0x48] sm:$0xff]
        %v1747 = vld [vmem:[#allocation9 + $0x50] sm:$0xff]
        %v1748 = vld [vmem:[#allocation9 + $0x58] sm:$0xff]
        %v1749 = vld [vmem:[#allocation9 + $0x60] sm:$0xff]
        %v1750 = vld [vmem:[#allocation9 + $0x68] sm:$0xff]
        %v1751 = vld [vmem:[#allocation9 + $0x70] sm:$0xff]
        %v1752 = vld [vmem:[#allocation9 + $0x78] sm:$0xff]
        %v1753 = vld [vmem:[%s6] sm:$0x1]
        %v1755 = vlaneseq
        %v1756 = vshrl.u32 %v1755, 7
        %v1757 = vsub.s32 0, %v1756
        %v1758 = vrot.slane %v1753, %v1757
        %1760 = vmatprep.subr.mxu0 0.0
        %1761 = vmatpush1.msra.mxu0 %v1737
        %1762 = vmatprep.subr.mxu0 0.0
        %1763 = vmatpush1.msra.mxu0 %v1738
        %1764 = vmatprep.subr.mxu0 0.0
        %1765 = vmatpush1.msra.mxu0 %v1739
        %1766 = vmatprep.subr.mxu0 0.0
        %1767 = vmatpush1.msra.mxu0 %v1740
        %1768 = vmatprep.subr.mxu0 0.0
        %1769 = vmatpush1.msra.mxu0 %v1741
        %1770 = vmatprep.subr.mxu0 0.0
        %1771 = vmatpush1.msra.mxu0 %v1742
        %1772 = vmatprep.subr.mxu0 0.0
        %1773 = vmatpush1.msra.mxu0 %v1743
        %1774 = vmatprep.subr.mxu0 0.0
        %1775 = vmatpush1.msra.mxu0 %v1744
        %1776 = vmatprep.subr.mxu0 0.0
        %1777 = vmatpush1.msra.mxu0 %v1745
        %1778 = vmatprep.subr.mxu0 0.0
        %1779 = vmatpush1.msra.mxu0 %v1746
        %1780 = vmatprep.subr.mxu0 0.0
        %1781 = vmatpush1.msra.mxu0 %v1747
        %1782 = vmatprep.subr.mxu0 0.0
        %1783 = vmatpush1.msra.mxu0 %v1748
        %1784 = vmatprep.subr.mxu0 0.0
        %1785 = vmatpush1.msra.mxu0 %v1749
        %1786 = vmatprep.subr.mxu0 0.0
        %1787 = vmatpush1.msra.mxu0 %v1750
        %1788 = vmatprep.subr.mxu0 0.0
        %1789 = vmatpush1.msra.mxu0 %v1751
        %1790 = vmatprep.subr.mxu0 0.0
        %1791 = vmatpush1.msra.mxu0 %v1752
        %1792 = vmatprep.subr.mxu0 0.0
        %1793 = vmatpush1.msra.mxu0 0.0
        %1794 = vmatprep.subr.mxu0 0.0
        %1795 = vmatpush1.msra.mxu0 0.0
        %1796 = vmatprep.subr.mxu0 0.0
        %1797 = vmatpush1.msra.mxu0 0.0
        %1798 = vmatprep.subr.mxu0 0.0
        %1799 = vmatpush1.msra.mxu0 0.0
        %1800 = vmatprep.subr.mxu0 0.0
        %1801 = vmatpush1.msra.mxu0 0.0
        %1802 = vmatprep.subr.mxu0 0.0
        %1803 = vmatpush1.msra.mxu0 0.0
        %1804 = vmatprep.subr.mxu0 0.0
        %1805 = vmatpush1.msra.mxu0 0.0
        %1806 = vmatprep.subr.mxu0 0.0
        %1807 = vmatpush1.msra.mxu0 0.0
        %1808 = vmatprep.subr.mxu0 0.0
        %1809 = vmatpush1.msra.mxu0 0.0
        %1810 = vmatprep.subr.mxu0 0.0
        %1811 = vmatpush1.msra.mxu0 0.0
        %1812 = vmatprep.subr.mxu0 0.0
        %1813 = vmatpush1.msra.mxu0 0.0
        %1814 = vmatprep.subr.mxu0 0.0
        %1815 = vmatpush1.msra.mxu0 0.0
        %1816 = vmatprep.subr.mxu0 0.0
        %1817 = vmatpush1.msra.mxu0 0.0
        %1818 = vmatprep.subr.mxu0 0.0
        %1819 = vmatpush1.msra.mxu0 0.0
        %1820 = vmatprep.subr.mxu0 0.0
        %1821 = vmatpush1.msra.mxu0 0.0
        %1822 = vmatprep.subr.mxu0 0.0
        %1823 = vmatpush1.msra.mxu0 0.0
        %1824 = vmatprep.mubr.f32.mxu0 0.0
        %1825 = vmatmul.mubr.f32.gmra.mrb[0].mxu0 %v1705
        %v1826 = vpop.f32.mrb[0].mxu0
        %v1827 = vadd.f32 %v1758, %v1826
        %v1828 = vpop.f32.mrb[0].mxu0
        %1829 = vmatprep.mubr.f32.mxu0 0.0
        %1830 = vmatmul.mubr.f32.gmra.mrb[0].mxu0 %v1706
        %v1831 = vpop.f32.mrb[0].mxu0
        %v1832 = vadd.f32 %v1758, %v1831
        %v1833 = vpop.f32.mrb[0].mxu0
        %1834 = vmatprep.mubr.f32.mxu0 0.0
        %1835 = vmatmul.mubr.f32.gmra.mrb[0].mxu0 %v1707
        %v1836 = vpop.f32.mrb[0].mxu0
        %v1837 = vadd.f32 %v1758, %v1836
        %v1838 = vpop.f32.mrb[0].mxu0
        %1839 = vmatprep.mubr.f32.mxu0 0.0
        %1840 = vmatmul.mubr.f32.gmra.mrb[0].mxu0 %v1708
        %v1841 = vpop.f32.mrb[0].mxu0
        %v1842 = vadd.f32 %v1758, %v1841
        %v1843 = vpop.f32.mrb[0].mxu0
        %1844 = vmatprep.mubr.f32.mxu0 0.0
        %1845 = vmatmul.mubr.f32.gmra.mrb[0].mxu0 %v1709
        %v1846 = vpop.f32.mrb[0].mxu0
        %v1847 = vadd.f32 %v1758, %v1846
        %v1848 = vpop.f32.mrb[0].mxu0
        %1849 = vmatprep.mubr.f32.mxu0 0.0
        %1850 = vmatmul.mubr.f32.gmra.mrb[0].mxu0 %v1710
        %v1851 = vpop.f32.mrb[0].mxu0
        %v1852 = vadd.f32 %v1758, %v1851
        %v1853 = vpop.f32.mrb[0].mxu0
        %1854 = vmatprep.mubr.f32.mxu0 0.0
        %1855 = vmatmul.mubr.f32.gmra.mrb[0].mxu0 %v1711
        %v1856 = vpop.f32.mrb[0].mxu0
        %v1857 = vadd.f32 %v1758, %v1856
        %v1858 = vpop.f32.mrb[0].mxu0
        %1859 = vmatprep.mubr.f32.mxu0 0.0
        %1860 = vmatmul.mubr.f32.gmra.mrb[0].mxu0 %v1712
        %v1861 = vpop.f32.mrb[0].mxu0
        %v1862 = vadd.f32 %v1758, %v1861
        %v1863 = vpop.f32.mrb[0].mxu0
        %1864 = vmatprep.mubr.f32.mxu0 0.0
        %1865 = vmatmul.mubr.f32.gmra.mrb[0].mxu0 %v1713
        %v1866 = vpop.f32.mrb[0].mxu0
        %v1867 = vadd.f32 %v1758, %v1866
        %v1868 = vpop.f32.mrb[0].mxu0
        %1869 = vmatprep.mubr.f32.mxu0 0.0
        %1870 = vmatmul.mubr.f32.gmra.mrb[0].mxu0 %v1714
        %v1871 = vpop.f32.mrb[0].mxu0
        %v1872 = vadd.f32 %v1758, %v1871
        %v1873 = vpop.f32.mrb[0].mxu0
        %1874 = vmatprep.mubr.f32.mxu0 0.0
        %1875 = vmatmul.mubr.f32.gmra.mrb[0].mxu0 %v1715
        %v1876 = vpop.f32.mrb[0].mxu0
        %v1877 = vadd.f32 %v1758, %v1876
        %v1878 = vpop.f32.mrb[0].mxu0
        %1879 = vmatprep.mubr.f32.mxu0 0.0
        %1880 = vmatmul.mubr.f32.gmra.mrb[0].mxu0 %v1716
        %v1881 = vpop.f32.mrb[0].mxu0
        %v1882 = vadd.f32 %v1758, %v1881
        %v1883 = vpop.f32.mrb[0].mxu0
        %1884 = vmatprep.mubr.f32.mxu0 0.0
        %1885 = vmatmul.mubr.f32.gmra.mrb[0].mxu0 %v1717
        %v1886 = vpop.f32.mrb[0].mxu0
        %v1887 = vadd.f32 %v1758, %v1886
        %v1888 = vpop.f32.mrb[0].mxu0
        %1889 = vmatprep.mubr.f32.mxu0 0.0
        %1890 = vmatmul.mubr.f32.gmra.mrb[0].mxu0 %v1718
        %v1891 = vpop.f32.mrb[0].mxu0
        %v1892 = vadd.f32 %v1758, %v1891
        %v1893 = vpop.f32.mrb[0].mxu0
        %1894 = vmatprep.mubr.f32.mxu0 0.0
        %1895 = vmatmul.mubr.f32.gmra.mrb[0].mxu0 %v1719
        %v1896 = vpop.f32.mrb[0].mxu0
        %v1897 = vadd.f32 %v1758, %v1896
        %v1898 = vpop.f32.mrb[0].mxu0
        %1899 = vmatprep.mubr.f32.mxu0 0.0
        %1900 = vmatmul.mubr.f32.gmra.mrb[0].mxu0 %v1720
        %v1901 = vpop.f32.mrb[0].mxu0
        %v1902 = vadd.f32 %v1758, %v1901
        %v1903 = vpop.f32.mrb[0].mxu0
        %1904 = vmatprep.mubr.f32.mxu0 0.0
        %1905 = vmatmul.mubr.f32.gmra.mrb[0].mxu0 %v1721
        %v1906 = vpop.f32.mrb[0].mxu0
        %v1907 = vadd.f32 %v1758, %v1906
        %v1908 = vpop.f32.mrb[0].mxu0
        %1909 = vmatprep.mubr.f32.mxu0 0.0
        %1910 = vmatmul.mubr.f32.gmra.mrb[0].mxu0 %v1722
        %v1911 = vpop.f32.mrb[0].mxu0
        %v1912 = vadd.f32 %v1758, %v1911
        %v1913 = vpop.f32.mrb[0].mxu0
        %1914 = vmatprep.mubr.f32.mxu0 0.0
        %1915 = vmatmul.mubr.f32.gmra.mrb[0].mxu0 %v1723
        %v1916 = vpop.f32.mrb[0].mxu0
        %v1917 = vadd.f32 %v1758, %v1916
        %v1918 = vpop.f32.mrb[0].mxu0
        %1919 = vmatprep.mubr.f32.mxu0 0.0
        %1920 = vmatmul.mubr.f32.gmra.mrb[0].mxu0 %v1724
        %v1921 = vpop.f32.mrb[0].mxu0
        %v1922 = vadd.f32 %v1758, %v1921
        %v1923 = vpop.f32.mrb[0].mxu0
        %1924 = vmatprep.mubr.f32.mxu0 0.0
        %1925 = vmatmul.mubr.f32.gmra.mrb[0].mxu0 %v1725
        %v1926 = vpop.f32.mrb[0].mxu0
        %v1927 = vadd.f32 %v1758, %v1926
        %v1928 = vpop.f32.mrb[0].mxu0
        %1929 = vmatprep.mubr.f32.mxu0 0.0
        %1930 = vmatmul.mubr.f32.gmra.mrb[0].mxu0 %v1726
        %v1931 = vpop.f32.mrb[0].mxu0
        %v1932 = vadd.f32 %v1758, %v1931
        %v1933 = vpop.f32.mrb[0].mxu0
        %1934 = vmatprep.mubr.f32.mxu0 0.0
        %1935 = vmatmul.mubr.f32.gmra.mrb[0].mxu0 %v1727
        %v1936 = vpop.f32.mrb[0].mxu0
        %v1937 = vadd.f32 %v1758, %v1936
        %v1938 = vpop.f32.mrb[0].mxu0
        %1939 = vmatprep.mubr.f32.mxu0 0.0
        %1940 = vmatmul.mubr.f32.gmra.mrb[0].mxu0 %v1728
        %v1941 = vpop.f32.mrb[0].mxu0
        %v1942 = vadd.f32 %v1758, %v1941
        %v1943 = vpop.f32.mrb[0].mxu0
        %1944 = vmatprep.mubr.f32.mxu0 0.0
        %1945 = vmatmul.mubr.f32.gmra.mrb[0].mxu0 %v1729
        %v1946 = vpop.f32.mrb[0].mxu0
        %v1947 = vadd.f32 %v1758, %v1946
        %v1948 = vpop.f32.mrb[0].mxu0
        %1949 = vmatprep.mubr.f32.mxu0 0.0
        %1950 = vmatmul.mubr.f32.gmra.mrb[0].mxu0 %v1730
        %v1951 = vpop.f32.mrb[0].mxu0
        %v1952 = vadd.f32 %v1758, %v1951
        %v1953 = vpop.f32.mrb[0].mxu0
        %1954 = vmatprep.mubr.f32.mxu0 0.0
        %1955 = vmatmul.mubr.f32.gmra.mrb[0].mxu0 %v1731
        %v1956 = vpop.f32.mrb[0].mxu0
        %v1957 = vadd.f32 %v1758, %v1956
        %v1958 = vpop.f32.mrb[0].mxu0
        %1959 = vmatprep.mubr.f32.mxu0 0.0
        %1960 = vmatmul.mubr.f32.gmra.mrb[0].mxu0 %v1732
        %v1961 = vpop.f32.mrb[0].mxu0
        %v1962 = vadd.f32 %v1758, %v1961
        %v1963 = vpop.f32.mrb[0].mxu0
        %1964 = vmatprep.mubr.f32.mxu0 0.0
        %1965 = vmatmul.mubr.f32.gmra.mrb[0].mxu0 %v1733
        %v1966 = vpop.f32.mrb[0].mxu0
        %v1967 = vadd.f32 %v1758, %v1966
        %v1968 = vpop.f32.mrb[0].mxu0
        %1969 = vmatprep.mubr.f32.mxu0 0.0
        %1970 = vmatmul.mubr.f32.gmra.mrb[0].mxu0 %v1734
        %v1971 = vpop.f32.mrb[0].mxu0
        %v1972 = vadd.f32 %v1758, %v1971
        %v1973 = vpop.f32.mrb[0].mxu0
        %1974 = vmatprep.mubr.f32.mxu0 0.0
        %1975 = vmatmul.mubr.f32.gmra.mrb[0].mxu0 %v1735
        %v1976 = vpop.f32.mrb[0].mxu0
        %v1977 = vadd.f32 %v1758, %v1976
        %v1978 = vpop.f32.mrb[0].mxu0
        %1979 = vmatprep.mubr.f32.mxu0 0.0
        %1980 = vmatmul.mubr.f32.gmra.mrb[0].mxu0 %v1736
        %v1981 = vpop.f32.mrb[0].mxu0
        %v1982 = vadd.f32 %v1758, %v1981
        %v1983 = vpop.f32.mrb[0].mxu0
        %1984 = vdwg.mxu0
        %v1985 = vadd.f32 %v1827, %v341
        %v1986 = vadd.f32 %v1832, %v342
        %v1987 = vadd.f32 %v1837, %v343
        %v1988 = vadd.f32 %v1842, %v344
        %v1989 = vadd.f32 %v1847, %v345
        %v1990 = vadd.f32 %v1852, %v346
        %v1991 = vadd.f32 %v1857, %v347
        %v1992 = vadd.f32 %v1862, %v348
        %v1993 = vadd.f32 %v1867, %v349
        %v1994 = vadd.f32 %v1872, %v350
        %v1995 = vadd.f32 %v1877, %v351
        %v1996 = vadd.f32 %v1882, %v352
        %v1997 = vadd.f32 %v1887, %v353
        %v1998 = vadd.f32 %v1892, %v354
        %v1999 = vadd.f32 %v1897, %v355
        %v2000 = vadd.f32 %v1902, %v356
        %v2001 = vadd.f32 %v1907, %v357
        %v2002 = vadd.f32 %v1912, %v358
        %v2003 = vadd.f32 %v1917, %v359
        %v2004 = vadd.f32 %v1922, %v360
        %v2005 = vadd.f32 %v1927, %v361
        %v2006 = vadd.f32 %v1932, %v362
        %v2007 = vadd.f32 %v1937, %v363
        %v2008 = vadd.f32 %v1942, %v364
        %v2009 = vadd.f32 %v1947, %v365
        %v2010 = vadd.f32 %v1952, %v366
        %v2011 = vadd.f32 %v1957, %v367
        %v2012 = vadd.f32 %v1962, %v368
        %v2013 = vadd.f32 %v1967, %v369
        %v2014 = vadd.f32 %v1972, %v370
        %v2015 = vadd.f32 %v1977, %v371
        %v2016 = vadd.f32 %v1982, %v372
        %2017 = vst [vmem:[%s340] sm:$0xff] %v1985
        %2018 = vst [vmem:[%s340 + $0x8] sm:$0xff] %v1986
        %2019 = vst [vmem:[%s340 + $0x10] sm:$0xff] %v1987
        %2020 = vst [vmem:[%s340 + $0x18] sm:$0xff] %v1988
        %2021 = vst [vmem:[%s340 + $0x20] sm:$0xff] %v1989
        %2022 = vst [vmem:[%s340 + $0x28] sm:$0xff] %v1990
        %2023 = vst [vmem:[%s340 + $0x30] sm:$0xff] %v1991
        %2024 = vst [vmem:[%s340 + $0x38] sm:$0xff] %v1992
        %2025 = vst [vmem:[%s340 + $0x40] sm:$0xff] %v1993
        %2026 = vst [vmem:[%s340 + $0x48] sm:$0xff] %v1994
        %2027 = vst [vmem:[%s340 + $0x50] sm:$0xff] %v1995
        %2028 = vst [vmem:[%s340 + $0x58] sm:$0xff] %v1996
        %2029 = vst [vmem:[%s340 + $0x60] sm:$0xff] %v1997
        %2030 = vst [vmem:[%s340 + $0x68] sm:$0xff] %v1998
        %2031 = vst [vmem:[%s340 + $0x70] sm:$0xff] %v1999
        %2032 = vst [vmem:[%s340 + $0x78] sm:$0xff] %v2000
        %2033 = vst [vmem:[%s340 + $0x80] sm:$0xff] %v2001
        %2034 = vst [vmem:[%s340 + $0x88] sm:$0xff] %v2002
        %2035 = vst [vmem:[%s340 + $0x90] sm:$0xff] %v2003
        %2036 = vst [vmem:[%s340 + $0x98] sm:$0xff] %v2004
        %2037 = vst [vmem:[%s340 + $0xa0] sm:$0xff] %v2005
        %2038 = vst [vmem:[%s340 + $0xa8] sm:$0xff] %v2006
        %2039 = vst [vmem:[%s340 + $0xb0] sm:$0xff] %v2007
        %2040 = vst [vmem:[%s340 + $0xb8] sm:$0xff] %v2008
        %2041 = vst [vmem:[%s340 + $0xc0] sm:$0xff] %v2009
        %2042 = vst [vmem:[%s340 + $0xc8] sm:$0xff] %v2010
        %2043 = vst [vmem:[%s340 + $0xd0] sm:$0xff] %v2011
        %2044 = vst [vmem:[%s340 + $0xd8] sm:$0xff] %v2012
        %2045 = vst [vmem:[%s340 + $0xe0] sm:$0xff] %v2013
        %2046 = vst [vmem:[%s340 + $0xe8] sm:$0xff] %v2014
        %2047 = vst [vmem:[%s340 + $0xf0] sm:$0xff] %v2015
        %2048 = vst [vmem:[%s340 + $0xf8] sm:$0xff] %v2016
        %s2049 = sand.u32 %s186, 1
        %s2050 = scalar_lea.sflag [#allocation5], %s2049
        %s2051 = sand.u32 %s186, 1
        %s2052 = smul.addr %s2051, 256
        %s2053 = scalar_lea.vmem [#allocation11], %s2052
        // Predicated region
        $region65: #{tpu_custom_call.1} parent=47 // pred_check
          %p2054 = pneg %p196
        $region66: #{tpu_custom_call.1} parent=47 // pred_check_branch
          %2056 = sbr.rel (%p2054) target = $region68
        $region67: #{tpu_custom_call.1} parent=47 // pred_region
          %s2058 = ssub.s32 4096, 4096
          %2059 = vsyncadd %s2050, %s2058
          %s2060 = smul.addr %s26, 32
          %s2061 = smul.addr %s2060, 128
          %s2062 = scalar_lea.hbm %s7, %s2061
          %s2063 = sshll.u32 %s2053, 4
          %s2064 = int_to_ptr.vmem [resolvable:$true] %s2063
          %2069 = dma.vmem_to_hbm [thread:$0]  %s2064, 4096, %s2062, %s2050, 128, 128, 8
        $region68: #{tpu_custom_call.1} parent=47 // pred_fallthru
          _
      $region48: #{tpu_custom_call.1} parent=5 // pred_fallthru
        _
      %p2070 = scmp.le.s32.totalorder 2, %s21
      // Predicated region
      $region69: #{tpu_custom_call.1} parent=5 // pred_check
        %p2071 = pneg %p2070
      $region70: #{tpu_custom_call.1} parent=5 // pred_check_branch
        %2073 = sbr.rel (%p2071) target = $region72
      $region71: #{tpu_custom_call.1} parent=5 // pred_region
        %s2074 = ssub.s32 %s21, 2
        // Predicated region
        $region73: #{tpu_custom_call.1} parent=71 // pred_check
          %p2075 = pneg %p202
        $region74: #{tpu_custom_call.1} parent=71 // pred_check_branch
          %2077 = sbr.rel (%p2075) target = $region76
        $region75: #{tpu_custom_call.1} parent=71 // pred_region
          %s2078 = sand.u32 %s187, 1
          %s2079 = scalar_lea.sflag [#allocation5], %s2078
          %s2080 = sand.u32 %s187, 1
          %s2081 = smul.addr %s2080, 256
          %s2082 = scalar_lea.vmem [#allocation11], %s2081
          %2083 = dma.done %s2079, 4096
        $region76: #{tpu_custom_call.1} parent=71 // pred_fallthru
          _
      $region72: #{tpu_custom_call.1} parent=5 // pred_fallthru
        _
    $region6: #{tpu_custom_call.1} parent=1 // loop_footer
      %s25 = sadd.s32 1, %s21
    $region7: #{tpu_custom_call.1} parent=1 // loop_footer_branch
      %20 = sbr.rel target = $region3
    $region8: #{tpu_custom_call.1} parent=1 // loop_exit
      _
    %2084 = vsyncpa [#allocation4], 1
    %s2085 = scalar_lea.sflag [#allocation4], 1
    %2086 = vsyncpa %s2085, 1
    %2087 = vsyncpa [#allocation7], 1
    %2088 = vsyncpa [#allocation10], 1
    %2089 = vsyncpa [#allocation5], 1
    %s2090 = scalar_lea.sflag [#allocation5], 1
    %2091 = vsyncpa %s2090, 1

</llo_original>
